<compile_context>
chip_gen: v7x
topology: tpu7x:2x2x1
jax: 0.10.0
libtpu: 0.0.40
codegen_flags: <defaults>
</compile_context>

<pallas_src>
import functools
import math

import jax
import jax.numpy as jnp
from jax.experimental import pallas as pl
from jax.experimental.pallas import tpu as pltpu

F32 = jnp.float32
BF16 = jnp.bfloat16

# EfficientNet-B4 architecture (width x1.4, depth x1.8 of B0, rounded):
# (kernel, stride, expand_ratio, out_channels, repeats)
STAGES = [
    (3, 1, 1, 24, 2),
    (3, 2, 6, 32, 4),
    (5, 2, 6, 56, 4),
    (3, 2, 6, 112, 6),
    (5, 1, 6, 160, 6),
    (5, 2, 6, 272, 8),
    (3, 1, 6, 448, 2),
]
STEM_C = 48
HEAD_C = 1792  # -> matches nn.Linear(in_features=1792, ...)

MAX_TM = 512   # matmul row tile (~85% of HBM roofline per tiling sweep)


def _cdiv(a, b):
    return -(-a // b)


def _round_up(x, m):
    return ((x + m - 1) // m) * m


@functools.lru_cache(maxsize=1)
def _vmem_limit():
    """Generation-aware scoped-VMEM limit: v5e/v6e have 128 MiB/core, v7x 64 MiB/TC."""
    try:
        cap = int(pltpu.get_tpu_info().vmem_capacity_bytes)
    except Exception:
        cap = 64 * 1024 * 1024
    if cap >= 96 * 1024 * 1024:
        return 96 * 1024 * 1024
    return 40 * 1024 * 1024


def _apply_act(y, act):
    if act == "none":
        return y
    if act == "silu":
        return y * jax.nn.sigmoid(y)
    raise ValueError(act)


# ----------------------------------------------------------------------------- kernels
def _pw_kernel(*refs, act, has_gate, has_res):
    """Fused 1x1-conv tile: (optional bf16 SE gate) * x -> matmul -> +bias -> act -> (+skip)."""
    i = 0
    x_ref = refs[i]; i += 1
    gate_ref = None
    if has_gate:
        gate_ref = refs[i]; i += 1
    w_ref = refs[i]; i += 1
    b_ref = refs[i]; i += 1
    res_ref = None
    if has_res:
        res_ref = refs[i]; i += 1
    o_ref = refs[i]

    x = x_ref[0]                                               # (TM, K) bf16
    if has_gate:
        x = x * gate_ref[0]                                    # bf16 per-image SE gate (1, K)
    y = jnp.dot(x, w_ref[...], preferred_element_type=F32)     # (TM, Cout) f32 on the MXU
    y = y + b_ref[...]                                          # folded-BN shift (1, Cout)
    y = _apply_act(y, act)
    if has_res:
        y = y + res_ref[0].astype(F32)                          # fused residual skip-add
    o_ref[0] = y.astype(o_ref.dtype)


def _dw_kernel(p_ref, w_ref, b_ref, o_ref, pool_ref, *, k, s, TH, Ho, Wo):
    """Depthwise KxK conv on one row tile of one image.  The k*s column-shifted planes
    are sliced + cast to f32 once (hoisted out of the tap loop); taps are cheap
    leading-dim row slices.  Fused folded-BN shift + SiLU and SE-pool partial sums."""
    t = pl.program_id(1)
    ext = (k - 1) // s
    THh = TH + ext
    row0 = t * TH

    w = w_ref[...].astype(F32)                                 # (k*k, C)
    b = b_ref[...]                                             # (1, C) f32

    # Hoisted column-shift + cast: k*s planes instead of k*k per-tap slices.
    planes = {}
    for kx in range(k):
        px, ox = kx % s, kx // s
        for py in range(s):
            ph = py * s + px
            planes[(py, kx)] = p_ref[0, ph, pl.ds(row0, THh), ox:ox + Wo, :].astype(F32)

    acc = None
    for ky in range(k):
        py, oy = ky % s, ky // s
        for kx in range(k):
            idx = ky * k + kx
            tap = planes[(py, kx)][oy:oy + TH]                 # (TH, Wo, C) leading-dim slice
            term = tap * w[idx:idx + 1]                        # (1, C) broadcast
            acc = term if acc is None else acc + term
    y = acc + b                                                # (TH, Wo, C)
    y = y * jax.nn.sigmoid(y)                                  # SiLU
    o_ref[0] = y.astype(o_ref.dtype)

    # Fused SE global-average-pool: per-tile partial sums, rows past Ho masked out
    # (they are zero-padded inputs / ragged rows whose main-output writes are dropped).
    ps = jnp.sum(y, axis=1)                                    # (TH, C)
    row_ids = jax.lax.broadcasted_iota(jnp.int32, ps.shape, 0) + row0
    ps = jnp.where(row_ids < Ho, ps, 0.0)
    pool_ref[0, 0] = jnp.sum(ps, axis=0, keepdims=True)        # (1, C)


# ---------------------------------------------------------------------------- wrappers
@functools.partial(jax.jit, static_argnames=("act",))
def pointwise_conv(x, w, bias, act="none", gate=None, residual=None):
    """x: (N, HW, K) bf16, w: (K, Cout) bf16 (BN scale pre-folded), bias: (Cout,) f32.
    Optional gate: (N, K) f32/bf16 (fused SE gate), residual: (N, HW, Cout) bf16."""
    N, HW, K = x.shape
    Cout = w.shape[1]

    # Tiny activations (< one row tile) are padded up to a multiple of 8 for layout
    # safety; large activations use ragged final tiles (OOB writes dropped) -> no extra
    # HBM pad pass on the mem-bound layers.
    orig_HW = HW
    if HW % 8 != 0 and HW < MAX_TM:
        pad_rows = _round_up(HW, 8) - HW
        x = jnp.pad(x, ((0, 0), (0, pad_rows), (0, 0)))
        if residual is not None:
            residual = jnp.pad(residual, ((0, 0), (0, pad_rows), (0, 0)))
        HW = HW + pad_rows
    TM = min(MAX_TM, _round_up(HW, 8))
    n_tiles = _cdiv(HW, TM)

    has_gate = gate is not None
    has_res = residual is not None
    in_specs = [pl.BlockSpec((1, TM, K), lambda b, i: (b, i, 0))]
    args = [x]
    if has_gate:
        in_specs.append(pl.BlockSpec((1, 1, K), lambda b, i: (b, 0, 0)))
        args.append(gate.reshape(N, 1, K).astype(BF16))
    in_specs.append(pl.BlockSpec((K, Cout), lambda b, i: (0, 0)))
    args.append(w)
    in_specs.append(pl.BlockSpec((1, Cout), lambda b, i: (0, 0)))
    args.append(bias.reshape(1, Cout).astype(F32))
    if has_res:
        in_specs.append(pl.BlockSpec((1, TM, Cout), lambda b, i: (b, i, 0)))
        args.append(residual)

    # TODO(synk): lane-dense (Cout padded to 128) outputs for the small-Cout stage-1..4
    # projections would need the padded channel width carried through the whole network.
    # TODO(synk): optional fp8 (v7x) / int8 (v5e/v6e) weights for the K>=960 expansions
    # and the 448->1792 head, gated behind accuracy validation.
    out = pl.pallas_call(
        functools.partial(_pw_kernel, act=act, has_gate=has_gate, has_res=has_res),
        out_shape=jax.ShapeDtypeStruct((N, HW, Cout), BF16),
        grid=(N, n_tiles),
        in_specs=in_specs,
        out_specs=pl.BlockSpec((1, TM, Cout), lambda b, i: (b, i, 0)),
        compiler_params=pltpu.CompilerParams(
            dimension_semantics=("parallel", "parallel"),
            vmem_limit_bytes=_vmem_limit()),
    )(*args)
    return out[:, :orig_HW] if HW != orig_HW else out


@functools.partial(jax.jit, static_argnames=("k", "s"))
def dwconv_bn_silu(x, w, bias, k, s):
    """Depthwise KxK conv (pad k//2, stride s) + folded-BN shift + SiLU, with fused SE
    global-average-pool partial sums.  x: (N,H,W,C) bf16 -> ((N,Ho,Wo,C) bf16, (N,C) f32 sums)."""
    N, H, W, C = x.shape
    pad = k // 2
    Ho = (H + 2 * pad - k) // s + 1
    Wo = (W + 2 * pad - k) // s + 1
    ext = (k - 1) // s
    TH = 16 if Ho >= 16 else (8 if Ho >= 8 else Ho)
    nt = _cdiv(Ho, TH)
    Hpad = nt * TH + ext
    Wph = Wo + ext

    xp = jnp.pad(x, ((0, 0), (pad, pad), (pad, pad), (0, 0)))
    # Decompose the padded image into s*s stride phases (single 1x copy; for s=1 it is
    # just the padded image).  Rows are zero-extended to Hpad so in-kernel halo reads
    # (pl.ds) are always in bounds; those rows only feed dropped ragged output rows.
    phases = []
    for py in range(s):
        for px in range(s):
            phv = xp[:, py::s, px::s, :][:, :Hpad, :Wph, :]
            if phv.shape[1] != Hpad or phv.shape[2] != Wph:
                phv = jnp.pad(phv, ((0, 0), (0, Hpad - phv.shape[1]),
                                    (0, Wph - phv.shape[2]), (0, 0)))
            phases.append(phv)
    p = jnp.stack(phases, axis=1)                              # (N, s*s, Hpad, Wph, C)

    out, pool = pl.pallas_call(
        functools.partial(_dw_kernel, k=k, s=s, TH=TH, Ho=Ho, Wo=Wo),
        out_shape=(jax.ShapeDtypeStruct((N, Ho, Wo, C), BF16),
                   jax.ShapeDtypeStruct((N, nt, 1, C), F32)),
        grid=(N, nt),
        in_specs=[
            pl.BlockSpec((1, s * s, Hpad, Wph, C), lambda b, t: (b, 0, 0, 0, 0)),
            pl.BlockSpec((k * k, C), lambda b, t: (0, 0)),
            pl.BlockSpec((1, C), lambda b, t: (0, 0)),
        ],
        out_specs=(
            pl.BlockSpec((1, TH, Wo, C), lambda b, t: (b, t, 0, 0)),
            pl.BlockSpec((1, 1, 1, C), lambda b, t: (b, t, 0, 0)),
        ),
        compiler_params=pltpu.CompilerParams(
            dimension_semantics=("parallel", "parallel"),
            vmem_limit_bytes=_vmem_limit()),
    )(p, w, bias.reshape(1, C).astype(F32))
    pool_sum = jnp.sum(pool[:, :, 0, :], axis=1)               # (N, C) f32
    return out, pool_sum


def stem_conv(x, p):
    """Stem 3x3/s2 conv + folded BN + SiLU via im2col (glue) + fused matmul kernel."""
    # TODO(synk): a phase/halo kernel like the depthwise path would avoid the 9x im2col
    # copy of the 3-channel input; minor at this channel width.
    N, H, W, C = x.shape
    k, s, pad = 3, 2, 1
    xp = jnp.pad(x, ((0, 0), (pad, pad), (pad, pad), (0, 0)))
    Ho = (H + 2 * pad - k) // s + 1
    Wo = (W + 2 * pad - k) // s + 1
    cols = [xp[:, dy:dy + s * Ho:s, dx:dx + s * Wo:s, :]
            for dy in range(k) for dx in range(k)]
    pcol = jnp.stack(cols, axis=3).reshape(N, Ho * Wo, k * k * C)
    y = pointwise_conv(pcol, p["w"], p["b"], act="silu")
    return y, Ho, Wo


# ------------------------------------------------------------------------------ blocks
def squeeze_excite_gate(pool_sum, n_positions, p):
    # SE FC layers stay in plain JAX (M = batch rows, widths as small as 6 -> a Pallas
    # launch would be pure overhead).  Returns the (N, C) gate; the gate multiply itself
    # is fused into the projection matmul kernel.
    pooled = pool_sum / float(n_positions)                     # (N, C) f32
    g = pooled @ p["se_w1"] + p["se_b1"]
    g = g * jax.nn.sigmoid(g)                                  # SiLU
    g = g @ p["se_w2"] + p["se_b2"]
    return jax.nn.sigmoid(g)                                   # (N, C) f32


def mbconv(x_flat, H, W, p, k, s, exp, in_c, out_c):
    N = x_flat.shape[0]
    mid = in_c * exp
    h = x_flat
    if exp != 1:  # pointwise expansion (1x1 conv + folded BN + SiLU)
        h = pointwise_conv(h, p["exp_w"], p["exp_b"], act="silu")
    # TODO(synk): the flat<->spatial reshapes around the depthwise kernel still cost an
    # XLA relayout copy (W is not a multiple of 8); removing them needs an in-kernel
    # unaligned sublane repack or an 8-padded canonical width.
    h_sp = h.reshape(N, H, W, mid)
    h_dw, pool_sum = dwconv_bn_silu(h_sp, p["dw_w"], p["dw_b"], k=k, s=s)
    Ho, Wo = h_dw.shape[1], h_dw.shape[2]
    gate = squeeze_excite_gate(pool_sum, Ho * Wo, p)
    res = x_flat if (s == 1 and in_c == out_c) else None
    # pointwise projection (1x1 conv + folded BN, no activation) with fused gate / skip
    y = pointwise_conv(h_dw.reshape(N, Ho * Wo, mid), p["proj_w"], p["proj_b"],
                       act="none", gate=gate, residual=res)    # drop-path identity (eval)
    return y, Ho, Wo


def effnet_b4_forward(params, x_nchw):
    x = jnp.transpose(x_nchw, (0, 2, 3, 1)).astype(BF16)       # NCHW -> NHWC, bf16
    x, H, W = stem_conv(x, params["stem"])
    in_c = STEM_C
    for (k, s, exp, out_c, reps), stage_params in zip(STAGES, params["stages"]):
        for r in range(reps):
            stride = s if r == 0 else 1
            x, H, W = mbconv(x, H, W, stage_params[r], k=k, s=stride,
                             exp=exp, in_c=in_c, out_c=out_c)
            in_c = out_c
    # head: 1x1 conv 448 -> 1792 + folded BN + SiLU
    x = pointwise_conv(x, params["head"]["w"], params["head"]["b"], act="silu")
    # global average pool + classifier Linear(1792, num_classes) + sigmoid (plain JAX:
    # M = batch, N = num_classes -> MXU would idle).
    feat = jnp.mean(x.astype(F32), axis=1)
    logits = feat @ params["cls"]["w"] + params["cls"]["b"]
    return jax.nn.sigmoid(logits)


# ------------------------------------------------------------------------------ params
class KeyGen:
    def __init__(self, key):
        self.key = key

    def __call__(self):
        self.key, sub = jax.random.split(self.key)
        return sub


def init_params(key, num_classes=1):
    kg = KeyGen(key)

    def nrm(shape, std):
        return (std * jax.random.normal(kg(), shape, F32)).astype(F32)

    def bn(c):  # folded eval-mode BatchNorm -> (scale, shift)
        gamma = 1.0 + 0.1 * jax.random.normal(kg(), (c,), F32)
        beta = 0.02 * jax.random.normal(kg(), (c,), F32)
        mean = 0.02 * jax.random.normal(kg(), (c,), F32)
        var = 1.0 + 0.1 * jnp.abs(jax.random.normal(kg(), (c,), F32))
        scale = gamma / jnp.sqrt(var + 1e-5)
        return scale, (beta - mean * scale)

    def folded(w, c_out):  # pre-fold BN scale into the conv weight; keep shift as bias
        scale, shift = bn(c_out)
        return (w * scale[None, :]).astype(BF16), shift.astype(F32)

    params = {}
    w, b = folded(nrm((3 * 3 * 3, STEM_C), 1.0 / math.sqrt(27.0)), STEM_C)
    params["stem"] = dict(w=w, b=b)

    stages = []
    in_c = STEM_C
    for (k, _, exp, out_c, reps) in STAGES:
        blocks = []
        for _r in range(reps):
            mid = in_c * exp
            rd = max(1, int(in_c * 0.25))
            bp = {}
            if exp != 1:
                bp["exp_w"], bp["exp_b"] = folded(nrm((in_c, mid), 1.0 / math.sqrt(in_c)), mid)
            bp["dw_w"], bp["dw_b"] = folded(nrm((k * k, mid), 1.0 / k), mid)
            bp["se_w1"] = nrm((mid, rd), 1.0 / math.sqrt(mid))
            bp["se_b1"] = nrm((rd,), 0.02)
            bp["se_w2"] = nrm((rd, mid), 1.0 / math.sqrt(rd))
            bp["se_b2"] = nrm((mid,), 0.02)
            bp["proj_w"], bp["proj_b"] = folded(nrm((mid, out_c), 1.0 / math.sqrt(mid)), out_c)
            blocks.append(bp)
            in_c = out_c
        stages.append(blocks)
    params["stages"] = stages

    w, b = folded(nrm((448, HEAD_C), 1.0 / math.sqrt(448.0)), HEAD_C)
    params["head"] = dict(w=w, b=b)
    params["cls"] = dict(w=nrm((HEAD_C, num_classes), 1.0 / math.sqrt(HEAD_C)),
                         b=jnp.zeros((num_classes,), F32))
    return params


if __name__ == "__main__":
    key = jax.random.PRNGKey(0)
    pkey, xkey = jax.random.split(key)
    params = init_params(pkey, num_classes=1)
    # small stand-in for the usual 380x380 B4 input; NCHW like PyTorch.
    x = jax.random.normal(xkey, (2, 3, 64, 64), F32)
    out = jax.jit(effnet_b4_forward)(params, x)
    out = jax.block_until_ready(out)
    assert out.shape == (2, 1), out.shape
    assert bool(jnp.all(jnp.isfinite(out)))
    assert bool(jnp.all((out >= 0.0) & (out <= 1.0)))
    print("KERNEL_OK")
</pallas_src>

<mosaic_0001>
module attributes {stable_mosaic.version = 11 : i64} {
  func.func @_pw_kernel(%arg0: i32, %arg1: i32, %arg2: memref<1x512x27xbf16, #tpu.memory_space<vmem>>, %arg3: memref<27x48xbf16, #tpu.memory_space<vmem>>, %arg4: memref<1x48xf32, #tpu.memory_space<vmem>>, %arg5: memref<1x512x48xbf16, #tpu.memory_space<vmem>>) attributes {dimension_semantics = [#tpu.dimension_semantics<parallel>, #tpu.dimension_semantics<parallel>], iteration_bounds = array<i64: 2, 2>, scalar_prefetch = 0 : i64, scratch_operands = 0 : i64, tpu.core_type = #tpu.core_type<tc>, window_params = [{transform_indices = @transform_0, window_bounds = array<i64: 1, 512, 27>}, {pipeline_mode = #tpu.pipeline_mode<synchronous>, transform_indices = @transform_1, window_bounds = array<i64: 27, 48>}, {pipeline_mode = #tpu.pipeline_mode<synchronous>, transform_indices = @transform_2, window_bounds = array<i64: 1, 48>}, {transform_indices = @transform_3, window_bounds = array<i64: 1, 512, 48>}]} {
    %c0 = arith.constant 0 : index
    %c0_0 = arith.constant 0 : index
    %c0_1 = arith.constant 0 : index
    %0 = vector.load %arg2[%c0, %c0_0, %c0_1] : memref<1x512x27xbf16, #tpu.memory_space<vmem>>, vector<1x512x27xbf16>
    %1 = vector.shape_cast %0 : vector<1x512x27xbf16> to vector<512x27xbf16>
    %c0_2 = arith.constant 0 : index
    %c0_3 = arith.constant 0 : index
    %2 = vector.load %arg3[%c0_2, %c0_3] : memref<27x48xbf16, #tpu.memory_space<vmem>>, vector<27x48xbf16>
    %cst = arith.constant dense<0.000000e+00> : vector<512x48xf32>
    %3 = tpu.matmul %1, %2, %cst {dimension_numbers = #tpu.dot_dimension_numbers<[1], [0], [0], [1], [0, 0, 1, 1], [], []>} : vector<512x27xbf16>, vector<27x48xbf16>, vector<512x48xf32> -> vector<512x48xf32>
    %c0_4 = arith.constant 0 : index
    %c0_5 = arith.constant 0 : index
    %4 = vector.load %arg4[%c0_4, %c0_5] : memref<1x48xf32, #tpu.memory_space<vmem>>, vector<1x48xf32>
    %5 = vector.broadcast %4 : vector<1x48xf32> to vector<512x48xf32>
    %6 = arith.addf %3, %5 : vector<512x48xf32>
    %7 = arith.negf %6 : vector<512x48xf32>
    %8 = math.exp %7 : vector<512x48xf32>
    %cst_6 = arith.constant 1.000000e+00 : f32
    %9 = vector.broadcast %cst_6 : f32 to vector<512x48xf32>
    %10 = arith.addf %9, %8 : vector<512x48xf32>
    %11 = arith.divf %9, %10 : vector<512x48xf32>
    %12 = arith.mulf %6, %11 : vector<512x48xf32>
    %13 = arith.truncf %12 : vector<512x48xf32> to vector<512x48xbf16>
    %c0_7 = arith.constant 0 : index
    %c0_8 = arith.constant 0 : index
    %c0_9 = arith.constant 0 : index
    %14 = vector.load %arg5[%c0_7, %c0_8, %c0_9] : memref<1x512x48xbf16, #tpu.memory_space<vmem>>, vector<1x512x48xbf16>
    %15 = vector.shape_cast %14 : vector<1x512x48xbf16> to vector<512x48xbf16>
    %16 = vector.shape_cast %13 : vector<512x48xbf16> to vector<1x512x48xbf16>
    tpu.vector_store %arg5[%c0_7, %c0_8, %c0_9], %16 {strides = array<i32>} : memref<1x512x48xbf16, #tpu.memory_space<vmem>>, vector<1x512x48xbf16>,
    return
  }
  func.func @transform_0(%arg0: i32, %arg1: i32) -> (i32, i32, i32) {
    %c0_i32 = arith.constant 0 : i32
    %c0_i32_0 = arith.constant 0 : i32
    return %arg0, %arg1, %c0_i32 : i32, i32, i32
  }
  func.func @transform_1(%arg0: i32, %arg1: i32) -> (i32, i32) {
    %c0_i32 = arith.constant 0 : i32
    %c0_i32_0 = arith.constant 0 : i32
    %c0_i32_1 = arith.constant 0 : i32
    return %c0_i32, %c0_i32_0 : i32, i32
  }
  func.func @transform_2(%arg0: i32, %arg1: i32) -> (i32, i32) {
    %c0_i32 = arith.constant 0 : i32
    %c0_i32_0 = arith.constant 0 : i32
    %c0_i32_1 = arith.constant 0 : i32
    return %c0_i32, %c0_i32_0 : i32, i32
  }
  func.func @transform_3(%arg0: i32, %arg1: i32) -> (i32, i32, i32) {
    %c0_i32 = arith.constant 0 : i32
    %c0_i32_0 = arith.constant 0 : i32
    return %arg0, %arg1, %c0_i32 : i32, i32, i32
  }
}

</mosaic_0001>

<llo_original>
// kernel: pointwise_conv.1
$region0: #{pointwise_conv.1}
  #allocation0 [shape = 'u32[]', space=smem, size = 0x4, offset = 0x4, fixed_abs, tag = 'smem constant byte address 0x4 - core index']
  #allocation1 [shape = 'u32[144,128]{1,0:T(1,128)}', space=vmem, size = 0x12000, scoped, tag = 'internal scratch']
  %s0 = inlined_call_operand.vmem [shape: bf16[2,1024,27], index: 0, kind: input, shape index: {}]
  %s1 = inlined_call_operand.vmem [shape: bf16[27,48], index: 1, kind: input, shape index: {}]
  %s2 = inlined_call_operand.vmem [shape: f32[1,48], index: 2, kind: input, shape index: {}]
  %s3 = inlined_call_operand.vmem [shape: bf16[2,1024,48], index: 3, kind: output, shape index: {}]
  %s4 = sld [smem:[#allocation0]]
  $region45: #{pointwise_conv.1} parent=0
    _
  %s6 = ssub.s32 1, %s4
  %s7 = scalar_select 0, %s6, %s4
  loop: start=0, step=1, limit=6
  $region2: #{pointwise_conv.1} parent=0 // loop_pre_header
    _
  $region3: #{pointwise_conv.1} parent=0 // loop_header
    %s9 = sphi 0, %s13
    %p10 = scmp.ge.s32.totalorder %s9, 6
    %s16 = sphi 0, %s28
    %s17 = sphi 0, %s24
    %s18 = sphi 0, %s16
    %s19 = sphi 0, %s17
    %s20 = sphi 0, %s18
    %s21 = sphi 0, %s19
    %s33 = sphi 0, %s35
    %s36 = sphi 0, %s33
    %s37 = sphi 0, %s36
    %s53 = sphi 0, %s37
    %s57 = sphi 0, %s57
    %s59 = sphi 0, %s57
    %s60 = sphi 0, %s59
    %s74 = sphi 0, %s60
    %s78 = sphi 0, %s78
    %s80 = sphi 0, %s78
    %s81 = sphi 0, %s80
    %s95 = sphi 0, %s81
    %s103 = sphi 0, %s105
    %s106 = sphi 0, %s103
    %s107 = sphi 0, %s106
    %s123 = sphi 0, %s107
  $region4: #{pointwise_conv.1} parent=0 // loop_header_branch
    %12 = sbr.rel (%p10) target = $region8
  $region5: #{pointwise_conv.1} parent=0 // loop_body
    %s14 = ssub.s32 %s9, 1
    %s15 = ssub.s32 %s9, 2
    %s22 = sadd.s32 1, %s17
    %p23 = scmp.ge.s32.totalorder %s22, 2
    %s24 = scalar_select %p23, 0, %s22
    %s25 = sadd.s32 1, %s16
    %s26 = scalar_select %p23, %s25, %s16
    %p27 = scmp.ge.s32.totalorder %s26, 2
    %s28 = scalar_select %p27, 0, %s26
    %s29 = ssub.s32 %s16, %s28
    %s30 = ssub.s32 %s17, %s24
    %s31 = sor.u32 %s29, %s30
    %p32 = scmp.eq.s32.totalorder %s31, 0
    %s34 = sadd.s32 %s33, 1
    %s35 = scalar_select %p32, %s33, %s34
    %p38 = pneg %p32
    %p39 = scmp.eq.s32.totalorder %s9, 3
    %p40 = por %p38, %p39
    %p41 = scmp.ne.s32.totalorder %s33, %s36
    %p42 = scmp.eq.s32.totalorder %s9, 0
    %p43 = por %p41, %p42
    %p44 = scmp.ne.s32.totalorder %s33, %s36
    %p45 = scmp.eq.s32.totalorder %s14, 3
    %p46 = por %p44, %p45
    %p47 = scmp.ne.s32.totalorder %s36, %s37
    %p48 = scmp.eq.s32.totalorder %s14, 0
    %p49 = por %p47, %p48
    %p50 = scmp.ne.s32.totalorder %s36, %s37
    %p51 = scmp.eq.s32.totalorder %s15, 3
    %p52 = por %p50, %p51
    %p54 = scmp.ne.s32.totalorder %s37, %s53
    %p55 = scmp.eq.s32.totalorder %s15, 0
    %p56 = por %p54, %p55
    %s58 = sadd.s32 %s57, 1
    %p61 = scmp.eq.s32.totalorder %s9, 3
    %p62 = scmp.ne.s32.totalorder %s57, %s59
    %p63 = scmp.eq.s32.totalorder %s9, 0
    %p64 = por %p62, %p63
    %p65 = scmp.ne.s32.totalorder %s57, %s59
    %p66 = scmp.eq.s32.totalorder %s14, 3
    %p67 = por %p65, %p66
    %p68 = scmp.ne.s32.totalorder %s59, %s60
    %p69 = scmp.eq.s32.totalorder %s14, 0
    %p70 = por %p68, %p69
    %p71 = scmp.ne.s32.totalorder %s59, %s60
    %p72 = scmp.eq.s32.totalorder %s15, 3
    %p73 = por %p71, %p72
    %p75 = scmp.ne.s32.totalorder %s60, %s74
    %p76 = scmp.eq.s32.totalorder %s15, 0
    %p77 = por %p75, %p76
    %s79 = sadd.s32 %s78, 1
    %p82 = scmp.eq.s32.totalorder %s9, 3
    %p83 = scmp.ne.s32.totalorder %s78, %s80
    %p84 = scmp.eq.s32.totalorder %s9, 0
    %p85 = por %p83, %p84
    %p86 = scmp.ne.s32.totalorder %s78, %s80
    %p87 = scmp.eq.s32.totalorder %s14, 3
    %p88 = por %p86, %p87
    %p89 = scmp.ne.s32.totalorder %s80, %s81
    %p90 = scmp.eq.s32.totalorder %s14, 0
    %p91 = por %p89, %p90
    %p92 = scmp.ne.s32.totalorder %s80, %s81
    %p93 = scmp.eq.s32.totalorder %s15, 3
    %p94 = por %p92, %p93
    %p96 = scmp.ne.s32.totalorder %s81, %s95
    %p97 = scmp.eq.s32.totalorder %s15, 0
    %p98 = por %p96, %p97
    %s99 = ssub.s32 %s16, %s28
    %s100 = ssub.s32 %s17, %s24
    %s101 = sor.u32 %s99, %s100
    %p102 = scmp.eq.s32.totalorder %s101, 0
    %s104 = sadd.s32 %s103, 1
    %s105 = scalar_select %p102, %s103, %s104
    %p108 = pneg %p102
    %p109 = scmp.eq.s32.totalorder %s9, 3
    %p110 = por %p108, %p109
    %p111 = scmp.ne.s32.totalorder %s103, %s106
    %p112 = scmp.eq.s32.totalorder %s9, 0
    %p113 = por %p111, %p112
    %p114 = scmp.ne.s32.totalorder %s103, %s106
    %p115 = scmp.eq.s32.totalorder %s14, 3
    %p116 = por %p114, %p115
    %p117 = scmp.ne.s32.totalorder %s106, %s107
    %p118 = scmp.eq.s32.totalorder %s14, 0
    %p119 = por %p117, %p118
    %p120 = scmp.ne.s32.totalorder %s106, %s107
    %p121 = scmp.eq.s32.totalorder %s15, 3
    %p122 = por %p120, %p121
    %p124 = scmp.ne.s32.totalorder %s107, %s123
    %p125 = scmp.eq.s32.totalorder %s15, 0
    %p126 = por %p124, %p125
    %p127 = scmp.le.s32.totalorder 1, %s9
    %p128 = scmp.lt.s32.totalorder %s9, 5
    %p129 = pnand %p127, %p128
    %p130 = pneg %p129
    // Predicated region
    $region9: #{pointwise_conv.1} parent=5 // pred_check
      _
    $region10: #{pointwise_conv.1} parent=5 // pred_check_branch
      %132 = sbr.rel (%p129) target = $region12
    $region11: #{pointwise_conv.1} parent=5 // pred_region
      %s133 = ssub.s32 %s9, 1
      // Predicated region
      $region13: #{pointwise_conv.1} parent=11 // pred_check
        %p134 = pneg %p70
      $region14: #{pointwise_conv.1} parent=11 // pred_check_branch
        %136 = sbr.rel (%p134) target = $region16
      $region15: #{pointwise_conv.1} parent=11 // pred_region
        _
      $region16: #{pointwise_conv.1} parent=11 // pred_fallthru
        _
      // Predicated region
      $region17: #{pointwise_conv.1} parent=11 // pred_check
        %p137 = pneg %p91
      $region18: #{pointwise_conv.1} parent=11 // pred_check_branch
        %139 = sbr.rel (%p137) target = $region20
      $region19: #{pointwise_conv.1} parent=11 // pred_region
        _
      $region20: #{pointwise_conv.1} parent=11 // pred_fallthru
        _
    $region12: #{pointwise_conv.1} parent=5 // pred_fallthru
      _
    %p140 = scmp.lt.s32.totalorder %s9, 4
    // Predicated region
    $region21: #{pointwise_conv.1} parent=5 // pred_check
      %p141 = pneg %p140
    $region22: #{pointwise_conv.1} parent=5 // pred_check_branch
      %143 = sbr.rel (%p141) target = $region24
    $region23: #{pointwise_conv.1} parent=5 // pred_region
      // Predicated region
      $region25: #{pointwise_conv.1} parent=23 // pred_check
        %p144 = pneg %p43
      $region26: #{pointwise_conv.1} parent=23 // pred_check_branch
        %146 = sbr.rel (%p144) target = $region28
      $region27: #{pointwise_conv.1} parent=23 // pred_region
        %s147 = smul.u32 64, %s17
        %p148 = scmp.lt.s32.totalorder %s16, 1
        %s149 = scalar_select %p148, %s16, 1
        %p150 = scmp.lt.s32.totalorder %s147, 127
        %s151 = scalar_select %p150, %s147, 127
        %s152 = smul.addr %s149, 128
        %s153 = sadd.s32 %s151, %s152
        %s154 = smul.addr %s153, 4
        %s155 = scalar_lea.vmem %s0, %s154
        %s156 = smul.u32 64, %s17
      $region28: #{pointwise_conv.1} parent=23 // pred_fallthru
        _
    $region24: #{pointwise_conv.1} parent=5 // pred_fallthru
      _
    %p157 = scmp.le.s32.totalorder 1, %s9
    %p158 = scmp.lt.s32.totalorder %s9, 5
    %p159 = pnand %p157, %p158
    %p160 = pneg %p159
    // Predicated region
    $region29: #{pointwise_conv.1} parent=5 // pred_check
      _
    $region30: #{pointwise_conv.1} parent=5 // pred_check_branch
      %162 = sbr.rel (%p159) target = $region32
    $region31: #{pointwise_conv.1} parent=5 // pred_region
      %s163 = ssub.s32 %s9, 1
      %s164 = smul.u32 64, %s19
      %p165 = scmp.lt.s32.totalorder %s18, 1
      %s166 = scalar_select %p165, %s18, 1
      %p167 = scmp.lt.s32.totalorder %s164, 127
      %s168 = scalar_select %p167, %s164, 127
      %s169 = smul.addr %s166, 128
      %s170 = sadd.s32 %s168, %s169
      %s171 = smul.addr %s170, 4
      %s172 = scalar_lea.vmem %s0, %s171
      %p173 = pneg %p49
      %p174 = pneg %p46
      %p175 = pneg %p70
      %p176 = pneg %p67
      %p177 = pneg %p91
      %p178 = pneg %p88
      %p179 = pneg %p119
      %p180 = pneg %p116
      %s181 = smul.u32 64, %s19
      %p182 = scmp.lt.s32.totalorder %s18, 1
      %s183 = scalar_select %p182, %s18, 1
      %p184 = scmp.lt.s32.totalorder %s181, 127
      %s185 = scalar_select %p184, %s181, 127
      %s186 = smul.addr %s183, 128
      %s187 = sadd.s32 %s185, %s186
      %s188 = smul.addr %s187, 4
      %s189 = scalar_lea.vmem %s3, %s188
      %s190 = smul.u32 64, %s19
      %p191 = scmp.lt.s32.totalorder %s18, 1
      %s192 = scalar_select %p191, %s18, 1
      %p193 = scmp.lt.s32.totalorder %s190, 127
      %s194 = scalar_select %p193, %s190, 127
      %s195 = smul.addr %s192, 128
      %s196 = sadd.s32 %s194, %s195
      %s197 = smul.addr %s196, 4
      %s198 = scalar_lea.vmem %s0, %s197
      %s199 = smul.u32 64, %s19
      %s200 = smul.u32 64, %s19
      %p201 = scmp.lt.s32.totalorder %s18, 1
      %s202 = scalar_select %p201, %s18, 1
      %p203 = scmp.lt.s32.totalorder %s200, 127
      %s204 = scalar_select %p203, %s200, 127
      %s205 = smul.addr %s202, 128
      %s206 = sadd.s32 %s204, %s205
      %s207 = smul.addr %s206, 4
      %s208 = scalar_lea.vmem %s3, %s207
      %s209 = smul.u32 64, %s19
      %v211 = vld [vmem:[%s198] sm:$0xf]
      %v212 = vld [vmem:[%s198 + $0x4] sm:$0xf]
      %v213 = vld [vmem:[%s198 + $0x8] sm:$0xf]
      %v214 = vld [vmem:[%s198 + $0xc] sm:$0xf]
      %v215 = vld [vmem:[%s198 + $0x10] sm:$0xf]
      %v216 = vld [vmem:[%s198 + $0x14] sm:$0xf]
      %v217 = vld [vmem:[%s198 + $0x18] sm:$0xf]
      %v218 = vld [vmem:[%s198 + $0x1c] sm:$0xf]
      %v219 = vld [vmem:[%s198 + $0x20] sm:$0xf]
      %v220 = vld [vmem:[%s198 + $0x24] sm:$0xf]
      %v221 = vld [vmem:[%s198 + $0x28] sm:$0xf]
      %v222 = vld [vmem:[%s198 + $0x2c] sm:$0xf]
      %v223 = vld [vmem:[%s198 + $0x30] sm:$0xf]
      %v224 = vld [vmem:[%s198 + $0x34] sm:$0xf]
      %v225 = vld [vmem:[%s198 + $0x38] sm:$0xf]
      %v226 = vld [vmem:[%s198 + $0x3c] sm:$0xf]
      %v227 = vld [vmem:[%s198 + $0x40] sm:$0xf]
      %v228 = vld [vmem:[%s198 + $0x44] sm:$0xf]
      %v229 = vld [vmem:[%s198 + $0x48] sm:$0xf]
      %v230 = vld [vmem:[%s198 + $0x4c] sm:$0xf]
      %v231 = vld [vmem:[%s198 + $0x50] sm:$0xf]
      %v232 = vld [vmem:[%s198 + $0x54] sm:$0xf]
      %v233 = vld [vmem:[%s198 + $0x58] sm:$0xf]
      %v234 = vld [vmem:[%s198 + $0x5c] sm:$0xf]
      %v235 = vld [vmem:[%s198 + $0x60] sm:$0xf]
      %v236 = vld [vmem:[%s198 + $0x64] sm:$0xf]
      %v237 = vld [vmem:[%s198 + $0x68] sm:$0xf]
      %v238 = vld [vmem:[%s198 + $0x6c] sm:$0xf]
      %v239 = vld [vmem:[%s198 + $0x70] sm:$0xf]
      %v240 = vld [vmem:[%s198 + $0x74] sm:$0xf]
      %v241 = vld [vmem:[%s198 + $0x78] sm:$0xf]
      %v242 = vld [vmem:[%s198 + $0x7c] sm:$0xf]
      %v243 = vld [vmem:[%s198 + $0x80] sm:$0xf]
      %v244 = vld [vmem:[%s198 + $0x84] sm:$0xf]
      %v245 = vld [vmem:[%s198 + $0x88] sm:$0xf]
      %v246 = vld [vmem:[%s198 + $0x8c] sm:$0xf]
      %v247 = vld [vmem:[%s198 + $0x90] sm:$0xf]
      %v248 = vld [vmem:[%s198 + $0x94] sm:$0xf]
      %v249 = vld [vmem:[%s198 + $0x98] sm:$0xf]
      %v250 = vld [vmem:[%s198 + $0x9c] sm:$0xf]
      %v251 = vld [vmem:[%s198 + $0xa0] sm:$0xf]
      %v252 = vld [vmem:[%s198 + $0xa4] sm:$0xf]
      %v253 = vld [vmem:[%s198 + $0xa8] sm:$0xf]
      %v254 = vld [vmem:[%s198 + $0xac] sm:$0xf]
      %v255 = vld [vmem:[%s198 + $0xb0] sm:$0xf]
      %v256 = vld [vmem:[%s198 + $0xb4] sm:$0xf]
      %v257 = vld [vmem:[%s198 + $0xb8] sm:$0xf]
      %v258 = vld [vmem:[%s198 + $0xbc] sm:$0xf]
      %v259 = vld [vmem:[%s198 + $0xc0] sm:$0xf]
      %v260 = vld [vmem:[%s198 + $0xc4] sm:$0xf]
      %v261 = vld [vmem:[%s198 + $0xc8] sm:$0xf]
      %v262 = vld [vmem:[%s198 + $0xcc] sm:$0xf]
      %v263 = vld [vmem:[%s198 + $0xd0] sm:$0xf]
      %v264 = vld [vmem:[%s198 + $0xd4] sm:$0xf]
      %v265 = vld [vmem:[%s198 + $0xd8] sm:$0xf]
      %v266 = vld [vmem:[%s198 + $0xdc] sm:$0xf]
      %v267 = vld [vmem:[%s198 + $0xe0] sm:$0xf]
      %v268 = vld [vmem:[%s198 + $0xe4] sm:$0xf]
      %v269 = vld [vmem:[%s198 + $0xe8] sm:$0xf]
      %v270 = vld [vmem:[%s198 + $0xec] sm:$0xf]
      %v271 = vld [vmem:[%s198 + $0xf0] sm:$0xf]
      %v272 = vld [vmem:[%s198 + $0xf4] sm:$0xf]
      %v273 = vld [vmem:[%s198 + $0xf8] sm:$0xf]
      %v274 = vld [vmem:[%s198 + $0xfc] sm:$0xf]
      %v275 = vld [vmem:[%s1] sm:$0xf]
      %v276 = vld [vmem:[%s1 + $0x4] sm:$0xf]
      %v277 = vld [vmem:[%s1 + $0x8] sm:$0xf]
      %v278 = vld [vmem:[%s1 + $0xc] sm:$0x3]
      %v279 = vld [vmem:[%s2] sm:$0x1]
      %v281 = vlaneseq
      %v282 = vshrl.u32 %v281, 7
      %v283 = vsub.s32 0, %v282
      %v284 = vrot.slane %v279, %v283
      %v350 = vunpack.c.l.b16 %v211
      %v351 = vunpack.c.l.b16 %v212
      %v352 = vunpack.c.l.b16 %v213
      %v353 = vunpack.c.l.b16 %v214
      %v354 = vunpack.c.l.b16 %v215
      %v355 = vunpack.c.l.b16 %v216
      %v356 = vunpack.c.l.b16 %v217
      %v357 = vunpack.c.l.b16 %v218
      %v358 = vunpack.c.l.b16 %v219
      %v359 = vunpack.c.l.b16 %v220
      %v360 = vunpack.c.l.b16 %v221
      %v361 = vunpack.c.l.b16 %v222
      %v362 = vunpack.c.l.b16 %v223
      %v363 = vunpack.c.l.b16 %v224
      %v364 = vunpack.c.l.b16 %v225
      %v365 = vunpack.c.l.b16 %v226
      %v366 = vunpack.c.l.b16 %v227
      %v367 = vunpack.c.l.b16 %v228
      %v368 = vunpack.c.l.b16 %v229
      %v369 = vunpack.c.l.b16 %v230
      %v370 = vunpack.c.l.b16 %v231
      %v371 = vunpack.c.l.b16 %v232
      %v372 = vunpack.c.l.b16 %v233
      %v373 = vunpack.c.l.b16 %v234
      %v374 = vunpack.c.l.b16 %v235
      %v375 = vunpack.c.l.b16 %v236
      %v376 = vunpack.c.l.b16 %v237
      %v377 = vunpack.c.l.b16 %v238
      %v378 = vunpack.c.l.b16 %v239
      %v379 = vunpack.c.l.b16 %v240
      %v380 = vunpack.c.l.b16 %v241
      %v381 = vunpack.c.l.b16 %v242
      %v382 = vunpack.c.l.b16 %v243
      %v383 = vunpack.c.l.b16 %v244
      %v384 = vunpack.c.l.b16 %v245
      %v385 = vunpack.c.l.b16 %v246
      %v386 = vunpack.c.l.b16 %v247
      %v387 = vunpack.c.l.b16 %v248
      %v388 = vunpack.c.l.b16 %v249
      %v389 = vunpack.c.l.b16 %v250
      %v390 = vunpack.c.l.b16 %v251
      %v391 = vunpack.c.l.b16 %v252
      %v392 = vunpack.c.l.b16 %v253
      %v393 = vunpack.c.l.b16 %v254
      %v394 = vunpack.c.l.b16 %v255
      %v395 = vunpack.c.l.b16 %v256
      %v396 = vunpack.c.l.b16 %v257
      %v397 = vunpack.c.l.b16 %v258
      %v398 = vunpack.c.l.b16 %v259
      %v399 = vunpack.c.l.b16 %v260
      %v400 = vunpack.c.l.b16 %v261
      %v401 = vunpack.c.l.b16 %v262
      %v402 = vunpack.c.l.b16 %v263
      %v403 = vunpack.c.l.b16 %v264
      %v404 = vunpack.c.l.b16 %v265
      %v405 = vunpack.c.l.b16 %v266
      %v406 = vunpack.c.l.b16 %v267
      %v407 = vunpack.c.l.b16 %v268
      %v408 = vunpack.c.l.b16 %v269
      %v409 = vunpack.c.l.b16 %v270
      %v410 = vunpack.c.l.b16 %v271
      %v411 = vunpack.c.l.b16 %v272
      %v412 = vunpack.c.l.b16 %v273
      %v413 = vunpack.c.l.b16 %v274
      %v414 = vpack.c.b16 %v351, %v350
      %v415 = vpack.c.b16 %v353, %v352
      %v416 = vpack.c.b16 %v355, %v354
      %v417 = vpack.c.b16 %v357, %v356
      %v418 = vpack.c.b16 %v359, %v358
      %v419 = vpack.c.b16 %v361, %v360
      %v420 = vpack.c.b16 %v363, %v362
      %v421 = vpack.c.b16 %v365, %v364
      %v422 = vpack.c.b16 %v367, %v366
      %v423 = vpack.c.b16 %v369, %v368
      %v424 = vpack.c.b16 %v371, %v370
      %v425 = vpack.c.b16 %v373, %v372
      %v426 = vpack.c.b16 %v375, %v374
      %v427 = vpack.c.b16 %v377, %v376
      %v428 = vpack.c.b16 %v379, %v378
      %v429 = vpack.c.b16 %v381, %v380
      %v430 = vpack.c.b16 %v383, %v382
      %v431 = vpack.c.b16 %v385, %v384
      %v432 = vpack.c.b16 %v387, %v386
      %v433 = vpack.c.b16 %v389, %v388
      %v434 = vpack.c.b16 %v391, %v390
      %v435 = vpack.c.b16 %v393, %v392
      %v436 = vpack.c.b16 %v395, %v394
      %v437 = vpack.c.b16 %v397, %v396
      %v438 = vpack.c.b16 %v399, %v398
      %v439 = vpack.c.b16 %v401, %v400
      %v440 = vpack.c.b16 %v403, %v402
      %v441 = vpack.c.b16 %v405, %v404
      %v442 = vpack.c.b16 %v407, %v406
      %v443 = vpack.c.b16 %v409, %v408
      %v444 = vpack.c.b16 %v411, %v410
      %v445 = vpack.c.b16 %v413, %v412
      %v450 = vunpack.c.l.b16 %v275
      %v451 = vunpack.c.l.b16 %v276
      %v452 = vunpack.c.l.b16 %v277
      %v453 = vunpack.c.l.b16 %v278
      %v454 = vpack.c.b16 %v451, %v450
      %v455 = vpack.c.b16 %v453, %v452
      %vm457 = vcmask 220160
      %v459 = vsel %vm457, %v414, 0
      %v462 = vsel %vm457, %v415, 0
      %v465 = vsel %vm457, %v416, 0
      %v468 = vsel %vm457, %v417, 0
      %v471 = vsel %vm457, %v418, 0
      %v474 = vsel %vm457, %v419, 0
      %v477 = vsel %vm457, %v420, 0
      %v480 = vsel %vm457, %v421, 0
      %v483 = vsel %vm457, %v422, 0
      %v486 = vsel %vm457, %v423, 0
      %v489 = vsel %vm457, %v424, 0
      %v492 = vsel %vm457, %v425, 0
      %v495 = vsel %vm457, %v426, 0
      %v498 = vsel %vm457, %v427, 0
      %v501 = vsel %vm457, %v428, 0
      %v504 = vsel %vm457, %v429, 0
      %v507 = vsel %vm457, %v430, 0
      %v510 = vsel %vm457, %v431, 0
      %v513 = vsel %vm457, %v432, 0
      %v516 = vsel %vm457, %v433, 0
      %v519 = vsel %vm457, %v434, 0
      %v522 = vsel %vm457, %v435, 0
      %v525 = vsel %vm457, %v436, 0
      %v528 = vsel %vm457, %v437, 0
      %v531 = vsel %vm457, %v438, 0
      %v534 = vsel %vm457, %v439, 0
      %v537 = vsel %vm457, %v440, 0
      %v540 = vsel %vm457, %v441, 0
      %v543 = vsel %vm457, %v442, 0
      %v546 = vsel %vm457, %v443, 0
      %v549 = vsel %vm457, %v444, 0
      %v552 = vsel %vm457, %v445, 0
      %vm554 = vcmask 1044480
      %vm555 = vcmask 1045504
      %v556 = vsel %vm554, 4294967295, 65535
      %v557 = vsel %vm555, %v556, 0
      %v559 = vand.u32 %v455, %v557
      %561 = vmatprep.subr.bf16.mxu0 0
      %562 = vmatpush1.bf16.msra.mxu0 %v454
      %563 = vmatprep.subr.bf16.mxu0 0
      %564 = vmatpush1.bf16.msra.mxu0 %v559
      %565 = vmatprep.subr.bf16.mxu0 0
      %566 = vmatpush1.bf16.msra.mxu0 0
      %567 = vmatprep.subr.bf16.mxu0 0
      %568 = vmatpush1.bf16.msra.mxu0 0
      %569 = vmatprep.subr.bf16.mxu0 0
      %570 = vmatpush1.bf16.msra.mxu0 0
      %571 = vmatprep.subr.bf16.mxu0 0
      %572 = vmatpush1.bf16.msra.mxu0 0
      %573 = vmatprep.subr.bf16.mxu0 0
      %574 = vmatpush1.bf16.msra.mxu0 0
      %575 = vmatprep.subr.bf16.mxu0 0
      %576 = vmatpush1.bf16.msra.mxu0 0
      %577 = vmatprep.subr.bf16.mxu0 0
      %578 = vmatpush1.bf16.msra.mxu0 0
      %579 = vmatprep.subr.bf16.mxu0 0
      %580 = vmatpush1.bf16.msra.mxu0 0
      %581 = vmatprep.subr.bf16.mxu0 0
      %582 = vmatpush1.bf16.msra.mxu0 0
      %583 = vmatprep.subr.bf16.mxu0 0
      %584 = vmatpush1.bf16.msra.mxu0 0
      %585 = vmatprep.subr.bf16.mxu0 0
      %586 = vmatpush1.bf16.msra.mxu0 0
      %587 = vmatprep.subr.bf16.mxu0 0
      %588 = vmatpush1.bf16.msra.mxu0 0
      %589 = vmatprep.subr.bf16.mxu0 0
      %590 = vmatpush1.bf16.msra.mxu0 0
      %591 = vmatprep.subr.bf16.mxu0 0
      %592 = vmatpush1.bf16.msra.mxu0 0
      %593 = vmatprep.mubr.bf16.mxu0 0
      %594 = vmatmul.mubr.bf16.gmra.mrb[0].mxu0 %v459
      %v595 = vpop.f32.mrb[0].mxu0
      %v596 = vadd.f32 %v284, %v595
      %v597 = vpop.f32.mrb[0].mxu0
      %v598 = vpop.f32.mrb[0].mxu0
      %v599 = vadd.f32 %v284, %v598
      %v600 = vpop.f32.mrb[0].mxu0
      %601 = vmatprep.mubr.bf16.mxu0 0
      %602 = vmatmul.mubr.bf16.gmra.mrb[0].mxu0 %v462
      %v603 = vpop.f32.mrb[0].mxu0
      %v604 = vadd.f32 %v284, %v603
      %v605 = vpop.f32.mrb[0].mxu0
      %v606 = vpop.f32.mrb[0].mxu0
      %v607 = vadd.f32 %v284, %v606
      %v608 = vpop.f32.mrb[0].mxu0
      %609 = vmatprep.mubr.bf16.mxu0 0
      %610 = vmatmul.mubr.bf16.gmra.mrb[0].mxu0 %v465
      %v611 = vpop.f32.mrb[0].mxu0
      %v612 = vadd.f32 %v284, %v611
      %v613 = vpop.f32.mrb[0].mxu0
      %v614 = vpop.f32.mrb[0].mxu0
      %v615 = vadd.f32 %v284, %v614
      %v616 = vpop.f32.mrb[0].mxu0
      %617 = vmatprep.mubr.bf16.mxu0 0
      %618 = vmatmul.mubr.bf16.gmra.mrb[0].mxu0 %v468
      %v619 = vpop.f32.mrb[0].mxu0
      %v620 = vadd.f32 %v284, %v619
      %v621 = vpop.f32.mrb[0].mxu0
      %v622 = vpop.f32.mrb[0].mxu0
      %v623 = vadd.f32 %v284, %v622
      %v624 = vpop.f32.mrb[0].mxu0
      %625 = vmatprep.mubr.bf16.mxu0 0
      %626 = vmatmul.mubr.bf16.gmra.mrb[0].mxu0 %v471
      %v627 = vpop.f32.mrb[0].mxu0
      %v628 = vadd.f32 %v284, %v627
      %v629 = vpop.f32.mrb[0].mxu0
      %v630 = vpop.f32.mrb[0].mxu0
      %v631 = vadd.f32 %v284, %v630
      %v632 = vpop.f32.mrb[0].mxu0
      %633 = vmatprep.mubr.bf16.mxu0 0
      %634 = vmatmul.mubr.bf16.gmra.mrb[0].mxu0 %v474
      %v635 = vpop.f32.mrb[0].mxu0
      %v636 = vadd.f32 %v284, %v635
      %v637 = vpop.f32.mrb[0].mxu0
      %v638 = vpop.f32.mrb[0].mxu0
      %v639 = vadd.f32 %v284, %v638
      %v640 = vpop.f32.mrb[0].mxu0
      %641 = vmatprep.mubr.bf16.mxu0 0
      %642 = vmatmul.mubr.bf16.gmra.mrb[0].mxu0 %v477
      %v643 = vpop.f32.mrb[0].mxu0
      %v644 = vadd.f32 %v284, %v643
      %v645 = vpop.f32.mrb[0].mxu0
      %v646 = vpop.f32.mrb[0].mxu0
      %v647 = vadd.f32 %v284, %v646
      %v648 = vpop.f32.mrb[0].mxu0
      %649 = vmatprep.mubr.bf16.mxu0 0
      %650 = vmatmul.mubr.bf16.gmra.mrb[0].mxu0 %v480
      %v651 = vpop.f32.mrb[0].mxu0
      %v652 = vadd.f32 %v284, %v651
      %v653 = vpop.f32.mrb[0].mxu0
      %v654 = vpop.f32.mrb[0].mxu0
      %v655 = vadd.f32 %v284, %v654
      %v656 = vpop.f32.mrb[0].mxu0
      %657 = vmatprep.mubr.bf16.mxu0 0
      %658 = vmatmul.mubr.bf16.gmra.mrb[0].mxu0 %v483
      %v659 = vpop.f32.mrb[0].mxu0
      %v660 = vadd.f32 %v284, %v659
      %v661 = vpop.f32.mrb[0].mxu0
      %v662 = vpop.f32.mrb[0].mxu0
      %v663 = vadd.f32 %v284, %v662
      %v664 = vpop.f32.mrb[0].mxu0
      %665 = vmatprep.mubr.bf16.mxu0 0
      %666 = vmatmul.mubr.bf16.gmra.mrb[0].mxu0 %v486
      %v667 = vpop.f32.mrb[0].mxu0
      %v668 = vadd.f32 %v284, %v667
      %v669 = vpop.f32.mrb[0].mxu0
      %v670 = vpop.f32.mrb[0].mxu0
      %v671 = vadd.f32 %v284, %v670
      %v672 = vpop.f32.mrb[0].mxu0
      %673 = vmatprep.mubr.bf16.mxu0 0
      %674 = vmatmul.mubr.bf16.gmra.mrb[0].mxu0 %v489
      %v675 = vpop.f32.mrb[0].mxu0
      %v676 = vadd.f32 %v284, %v675
      %v677 = vpop.f32.mrb[0].mxu0
      %v678 = vpop.f32.mrb[0].mxu0
      %v679 = vadd.f32 %v284, %v678
      %v680 = vpop.f32.mrb[0].mxu0
      %681 = vmatprep.mubr.bf16.mxu0 0
      %682 = vmatmul.mubr.bf16.gmra.mrb[0].mxu0 %v492
      %v683 = vpop.f32.mrb[0].mxu0
      %v684 = vadd.f32 %v284, %v683
      %v685 = vpop.f32.mrb[0].mxu0
      %v686 = vpop.f32.mrb[0].mxu0
      %v687 = vadd.f32 %v284, %v686
      %v688 = vpop.f32.mrb[0].mxu0
      %689 = vmatprep.mubr.bf16.mxu0 0
      %690 = vmatmul.mubr.bf16.gmra.mrb[0].mxu0 %v495
      %v691 = vpop.f32.mrb[0].mxu0
      %v692 = vadd.f32 %v284, %v691
      %v693 = vpop.f32.mrb[0].mxu0
      %v694 = vpop.f32.mrb[0].mxu0
      %v695 = vadd.f32 %v284, %v694
      %v696 = vpop.f32.mrb[0].mxu0
      %697 = vmatprep.mubr.bf16.mxu0 0
      %698 = vmatmul.mubr.bf16.gmra.mrb[0].mxu0 %v498
      %v699 = vpop.f32.mrb[0].mxu0
      %v700 = vadd.f32 %v284, %v699
      %v701 = vpop.f32.mrb[0].mxu0
      %v702 = vpop.f32.mrb[0].mxu0
      %v703 = vadd.f32 %v284, %v702
      %v704 = vpop.f32.mrb[0].mxu0
      %705 = vmatprep.mubr.bf16.mxu0 0
      %706 = vmatmul.mubr.bf16.gmra.mrb[0].mxu0 %v501
      %v707 = vpop.f32.mrb[0].mxu0
      %v708 = vadd.f32 %v284, %v707
      %v709 = vpop.f32.mrb[0].mxu0
      %v710 = vpop.f32.mrb[0].mxu0
      %v711 = vadd.f32 %v284, %v710
      %v712 = vpop.f32.mrb[0].mxu0
      %713 = vmatprep.mubr.bf16.mxu0 0
      %714 = vmatmul.mubr.bf16.gmra.mrb[0].mxu0 %v504
      %v715 = vpop.f32.mrb[0].mxu0
      %v716 = vadd.f32 %v284, %v715
      %v717 = vpop.f32.mrb[0].mxu0
      %v718 = vpop.f32.mrb[0].mxu0
      %v719 = vadd.f32 %v284, %v718
      %v720 = vpop.f32.mrb[0].mxu0
      %721 = vmatprep.mubr.bf16.mxu0 0
      %722 = vmatmul.mubr.bf16.gmra.mrb[0].mxu0 %v507
      %v723 = vpop.f32.mrb[0].mxu0
      %v724 = vadd.f32 %v284, %v723
      %v725 = vpop.f32.mrb[0].mxu0
      %v726 = vpop.f32.mrb[0].mxu0
      %v727 = vadd.f32 %v284, %v726
      %v728 = vpop.f32.mrb[0].mxu0
      %729 = vmatprep.mubr.bf16.mxu0 0
      %730 = vmatmul.mubr.bf16.gmra.mrb[0].mxu0 %v510
      %v731 = vpop.f32.mrb[0].mxu0
      %v732 = vadd.f32 %v284, %v731
      %v733 = vpop.f32.mrb[0].mxu0
      %v734 = vpop.f32.mrb[0].mxu0
      %v735 = vadd.f32 %v284, %v734
      %v736 = vpop.f32.mrb[0].mxu0
      %737 = vmatprep.mubr.bf16.mxu0 0
      %738 = vmatmul.mubr.bf16.gmra.mrb[0].mxu0 %v513
      %v739 = vpop.f32.mrb[0].mxu0
      %v740 = vadd.f32 %v284, %v739
      %v741 = vpop.f32.mrb[0].mxu0
      %v742 = vpop.f32.mrb[0].mxu0
      %v743 = vadd.f32 %v284, %v742
      %v744 = vpop.f32.mrb[0].mxu0
      %745 = vmatprep.mubr.bf16.mxu0 0
      %746 = vmatmul.mubr.bf16.gmra.mrb[0].mxu0 %v516
      %v747 = vpop.f32.mrb[0].mxu0
      %v748 = vadd.f32 %v284, %v747
      %v749 = vpop.f32.mrb[0].mxu0
      %v750 = vpop.f32.mrb[0].mxu0
      %v751 = vadd.f32 %v284, %v750
      %v752 = vpop.f32.mrb[0].mxu0
      %753 = vmatprep.mubr.bf16.mxu0 0
      %754 = vmatmul.mubr.bf16.gmra.mrb[0].mxu0 %v519
      %v755 = vpop.f32.mrb[0].mxu0
      %v756 = vadd.f32 %v284, %v755
      %v757 = vpop.f32.mrb[0].mxu0
      %v758 = vpop.f32.mrb[0].mxu0
      %v759 = vadd.f32 %v284, %v758
      %v760 = vpop.f32.mrb[0].mxu0
      %761 = vmatprep.mubr.bf16.mxu0 0
      %762 = vmatmul.mubr.bf16.gmra.mrb[0].mxu0 %v522
      %v763 = vpop.f32.mrb[0].mxu0
      %v764 = vadd.f32 %v284, %v763
      %v765 = vpop.f32.mrb[0].mxu0
      %v766 = vpop.f32.mrb[0].mxu0
      %v767 = vadd.f32 %v284, %v766
      %v768 = vpop.f32.mrb[0].mxu0
      %769 = vmatprep.mubr.bf16.mxu0 0
      %770 = vmatmul.mubr.bf16.gmra.mrb[0].mxu0 %v525
      %v771 = vpop.f32.mrb[0].mxu0
      %v772 = vadd.f32 %v284, %v771
      %v773 = vpop.f32.mrb[0].mxu0
      %v774 = vpop.f32.mrb[0].mxu0
      %v775 = vadd.f32 %v284, %v774
      %v776 = vpop.f32.mrb[0].mxu0
      %777 = vmatprep.mubr.bf16.mxu0 0
      %778 = vmatmul.mubr.bf16.gmra.mrb[0].mxu0 %v528
      %v779 = vpop.f32.mrb[0].mxu0
      %v780 = vadd.f32 %v284, %v779
      %v781 = vpop.f32.mrb[0].mxu0
      %v782 = vpop.f32.mrb[0].mxu0
      %v783 = vadd.f32 %v284, %v782
      %v784 = vpop.f32.mrb[0].mxu0
      %785 = vmatprep.mubr.bf16.mxu0 0
      %786 = vmatmul.mubr.bf16.gmra.mrb[0].mxu0 %v531
      %v787 = vpop.f32.mrb[0].mxu0
      %v788 = vadd.f32 %v284, %v787
      %v789 = vpop.f32.mrb[0].mxu0
      %v790 = vpop.f32.mrb[0].mxu0
      %v791 = vadd.f32 %v284, %v790
      %v792 = vpop.f32.mrb[0].mxu0
      %793 = vmatprep.mubr.bf16.mxu0 0
      %794 = vmatmul.mubr.bf16.gmra.mrb[0].mxu0 %v534
      %v795 = vpop.f32.mrb[0].mxu0
      %v796 = vadd.f32 %v284, %v795
      %v797 = vpop.f32.mrb[0].mxu0
      %v798 = vpop.f32.mrb[0].mxu0
      %v799 = vadd.f32 %v284, %v798
      %v800 = vpop.f32.mrb[0].mxu0
      %801 = vmatprep.mubr.bf16.mxu0 0
      %802 = vmatmul.mubr.bf16.gmra.mrb[0].mxu0 %v537
      %v803 = vpop.f32.mrb[0].mxu0
      %v804 = vadd.f32 %v284, %v803
      %v805 = vpop.f32.mrb[0].mxu0
      %v806 = vpop.f32.mrb[0].mxu0
      %v807 = vadd.f32 %v284, %v806
      %v808 = vpop.f32.mrb[0].mxu0
      %809 = vmatprep.mubr.bf16.mxu0 0
      %810 = vmatmul.mubr.bf16.gmra.mrb[0].mxu0 %v540
      %v811 = vpop.f32.mrb[0].mxu0
      %v812 = vadd.f32 %v284, %v811
      %v813 = vpop.f32.mrb[0].mxu0
      %v814 = vpop.f32.mrb[0].mxu0
      %v815 = vadd.f32 %v284, %v814
      %v816 = vpop.f32.mrb[0].mxu0
      %817 = vmatprep.mubr.bf16.mxu0 0
      %818 = vmatmul.mubr.bf16.gmra.mrb[0].mxu0 %v543
      %v819 = vpop.f32.mrb[0].mxu0
      %v820 = vadd.f32 %v284, %v819
      %v821 = vpop.f32.mrb[0].mxu0
      %v822 = vpop.f32.mrb[0].mxu0
      %v823 = vadd.f32 %v284, %v822
      %v824 = vpop.f32.mrb[0].mxu0
      %825 = vmatprep.mubr.bf16.mxu0 0
      %826 = vmatmul.mubr.bf16.gmra.mrb[0].mxu0 %v546
      %v827 = vpop.f32.mrb[0].mxu0
      %v828 = vadd.f32 %v284, %v827
      %v829 = vpop.f32.mrb[0].mxu0
      %v830 = vpop.f32.mrb[0].mxu0
      %v831 = vadd.f32 %v284, %v830
      %v832 = vpop.f32.mrb[0].mxu0
      %833 = vmatprep.mubr.bf16.mxu0 0
      %834 = vmatmul.mubr.bf16.gmra.mrb[0].mxu0 %v549
      %v835 = vpop.f32.mrb[0].mxu0
      %v836 = vadd.f32 %v284, %v835
      %v837 = vpop.f32.mrb[0].mxu0
      %v838 = vpop.f32.mrb[0].mxu0
      %v839 = vadd.f32 %v284, %v838
      %v840 = vpop.f32.mrb[0].mxu0
      %841 = vmatprep.mubr.bf16.mxu0 0
      %842 = vmatmul.mubr.bf16.gmra.mrb[0].mxu0 %v552
      %v843 = vpop.f32.mrb[0].mxu0
      %v844 = vadd.f32 %v284, %v843
      %v845 = vpop.f32.mrb[0].mxu0
      %v846 = vpop.f32.mrb[0].mxu0
      %v847 = vadd.f32 %v284, %v846
      %v848 = vpop.f32.mrb[0].mxu0
      %849 = vdwg.mxu0
      %v850 = vxor.u32 %v596, 2147483648
      %v851 = vxor.u32 %v599, 2147483648
      %v852 = vxor.u32 %v604, 2147483648
      %v853 = vxor.u32 %v607, 2147483648
      %v854 = vxor.u32 %v612, 2147483648
      %v855 = vxor.u32 %v615, 2147483648
      %v856 = vxor.u32 %v620, 2147483648
      %v857 = vxor.u32 %v623, 2147483648
      %v858 = vxor.u32 %v628, 2147483648
      %v859 = vxor.u32 %v631, 2147483648
      %v860 = vxor.u32 %v636, 2147483648
      %v861 = vxor.u32 %v639, 2147483648
      %v862 = vxor.u32 %v644, 2147483648
      %v863 = vxor.u32 %v647, 2147483648
      %v864 = vxor.u32 %v652, 2147483648
      %v865 = vxor.u32 %v655, 2147483648
      %v866 = vxor.u32 %v660, 2147483648
      %v867 = vxor.u32 %v663, 2147483648
      %v868 = vxor.u32 %v668, 2147483648
      %v869 = vxor.u32 %v671, 2147483648
      %v870 = vxor.u32 %v676, 2147483648
      %v871 = vxor.u32 %v679, 2147483648
      %v872 = vxor.u32 %v684, 2147483648
      %v873 = vxor.u32 %v687, 2147483648
      %v874 = vxor.u32 %v692, 2147483648
      %v875 = vxor.u32 %v695, 2147483648
      %v876 = vxor.u32 %v700, 2147483648
      %v877 = vxor.u32 %v703, 2147483648
      %v878 = vxor.u32 %v708, 2147483648
      %v879 = vxor.u32 %v711, 2147483648
      %v880 = vxor.u32 %v716, 2147483648
      %v881 = vxor.u32 %v719, 2147483648
      %v882 = vxor.u32 %v724, 2147483648
      %v883 = vxor.u32 %v727, 2147483648
      %v884 = vxor.u32 %v732, 2147483648
      %v885 = vxor.u32 %v735, 2147483648
      %v886 = vxor.u32 %v740, 2147483648
      %v887 = vxor.u32 %v743, 2147483648
      %v888 = vxor.u32 %v748, 2147483648
      %v889 = vxor.u32 %v751, 2147483648
      %v890 = vxor.u32 %v756, 2147483648
      %v891 = vxor.u32 %v759, 2147483648
      %v892 = vxor.u32 %v764, 2147483648
      %v893 = vxor.u32 %v767, 2147483648
      %v894 = vxor.u32 %v772, 2147483648
      %v895 = vxor.u32 %v775, 2147483648
      %v896 = vxor.u32 %v780, 2147483648
      %v897 = vxor.u32 %v783, 2147483648
      %v898 = vxor.u32 %v788, 2147483648
      %v899 = vxor.u32 %v791, 2147483648
      %v900 = vxor.u32 %v796, 2147483648
      %v901 = vxor.u32 %v799, 2147483648
      %v902 = vxor.u32 %v804, 2147483648
      %v903 = vxor.u32 %v807, 2147483648
      %v904 = vxor.u32 %v812, 2147483648
      %v905 = vxor.u32 %v815, 2147483648
      %v906 = vxor.u32 %v820, 2147483648
      %v907 = vxor.u32 %v823, 2147483648
      %v908 = vxor.u32 %v828, 2147483648
      %v909 = vxor.u32 %v831, 2147483648
      %v910 = vxor.u32 %v836, 2147483648
      %v911 = vxor.u32 %v839, 2147483648
      %v912 = vxor.u32 %v844, 2147483648
      %v913 = vxor.u32 %v847, 2147483648
      %v914 = vmul.f32 %v850, 1.442695
      %v915 = vpow.pop %v914
      %v916 = vmul.f32 %v851, 1.442695
      %v917 = vpow.pop %v916
      %v918 = vmul.f32 %v852, 1.442695
      %v919 = vpow.pop %v918
      %v920 = vmul.f32 %v853, 1.442695
      %v921 = vpow.pop %v920
      %v922 = vmul.f32 %v854, 1.442695
      %v923 = vpow.pop %v922
      %v924 = vmul.f32 %v855, 1.442695
      %v925 = vpow.pop %v924
      %v926 = vmul.f32 %v856, 1.442695
      %v927 = vpow.pop %v926
      %v928 = vmul.f32 %v857, 1.442695
      %v929 = vpow.pop %v928
      %v930 = vmul.f32 %v858, 1.442695
      %v931 = vpow.pop %v930
      %v932 = vmul.f32 %v859, 1.442695
      %v933 = vpow.pop %v932
      %v934 = vmul.f32 %v860, 1.442695
      %v935 = vpow.pop %v934
      %v936 = vmul.f32 %v861, 1.442695
      %v937 = vpow.pop %v936
      %v938 = vmul.f32 %v862, 1.442695
      %v939 = vpow.pop %v938
      %v940 = vmul.f32 %v863, 1.442695
      %v941 = vpow.pop %v940
      %v942 = vmul.f32 %v864, 1.442695
      %v943 = vpow.pop %v942
      %v944 = vmul.f32 %v865, 1.442695
      %v945 = vpow.pop %v944
      %v946 = vmul.f32 %v866, 1.442695
      %v947 = vpow.pop %v946
      %v948 = vmul.f32 %v867, 1.442695
      %v949 = vpow.pop %v948
      %v950 = vmul.f32 %v868, 1.442695
      %v951 = vpow.pop %v950
      %v952 = vmul.f32 %v869, 1.442695
      %v953 = vpow.pop %v952
      %v954 = vmul.f32 %v870, 1.442695
      %v955 = vpow.pop %v954
      %v956 = vmul.f32 %v871, 1.442695
      %v957 = vpow.pop %v956
      %v958 = vmul.f32 %v872, 1.442695
      %v959 = vpow.pop %v958
      %v960 = vmul.f32 %v873, 1.442695
      %v961 = vpow.pop %v960
      %v962 = vmul.f32 %v874, 1.442695
      %v963 = vpow.pop %v962
      %v964 = vmul.f32 %v875, 1.442695
      %v965 = vpow.pop %v964
      %v966 = vmul.f32 %v876, 1.442695
      %v967 = vpow.pop %v966
      %v968 = vmul.f32 %v877, 1.442695
      %v969 = vpow.pop %v968
      %v970 = vmul.f32 %v878, 1.442695
      %v971 = vpow.pop %v970
      %v972 = vmul.f32 %v879, 1.442695
      %v973 = vpow.pop %v972
      %v974 = vmul.f32 %v880, 1.442695
      %v975 = vpow.pop %v974
      %v976 = vmul.f32 %v881, 1.442695
      %v977 = vpow.pop %v976
      %v978 = vmul.f32 %v882, 1.442695
      %v979 = vpow.pop %v978
      %v980 = vmul.f32 %v883, 1.442695
      %v981 = vpow.pop %v980
      %v982 = vmul.f32 %v884, 1.442695
      %v983 = vpow.pop %v982
      %v984 = vmul.f32 %v885, 1.442695
      %v985 = vpow.pop %v984
      %v986 = vmul.f32 %v886, 1.442695
      %v987 = vpow.pop %v986
      %v988 = vmul.f32 %v887, 1.442695
      %v989 = vpow.pop %v988
      %v990 = vmul.f32 %v888, 1.442695
      %v991 = vpow.pop %v990
      %v992 = vmul.f32 %v889, 1.442695
      %v993 = vpow.pop %v992
      %v994 = vmul.f32 %v890, 1.442695
      %v995 = vpow.pop %v994
      %v996 = vmul.f32 %v891, 1.442695
      %v997 = vpow.pop %v996
      %v998 = vmul.f32 %v892, 1.442695
      %v999 = vpow.pop %v998
      %v1000 = vmul.f32 %v893, 1.442695
      %v1001 = vpow.pop %v1000
      %v1002 = vmul.f32 %v894, 1.442695
      %v1003 = vpow.pop %v1002
      %v1004 = vmul.f32 %v895, 1.442695
      %v1005 = vpow.pop %v1004
      %v1006 = vmul.f32 %v896, 1.442695
      %v1007 = vpow.pop %v1006
      %v1008 = vmul.f32 %v897, 1.442695
      %v1009 = vpow.pop %v1008
      %v1010 = vmul.f32 %v898, 1.442695
      %v1011 = vpow.pop %v1010
      %v1012 = vmul.f32 %v899, 1.442695
      %v1013 = vpow.pop %v1012
      %v1014 = vmul.f32 %v900, 1.442695
      %v1015 = vpow.pop %v1014
      %v1016 = vmul.f32 %v901, 1.442695
      %v1017 = vpow.pop %v1016
      %v1018 = vmul.f32 %v902, 1.442695
      %v1019 = vpow.pop %v1018
      %v1020 = vmul.f32 %v903, 1.442695
      %v1021 = vpow.pop %v1020
      %v1022 = vmul.f32 %v904, 1.442695
      %v1023 = vpow.pop %v1022
      %v1024 = vmul.f32 %v905, 1.442695
      %v1025 = vpow.pop %v1024
      %v1026 = vmul.f32 %v906, 1.442695
      %v1027 = vpow.pop %v1026
      %v1028 = vmul.f32 %v907, 1.442695
      %v1029 = vpow.pop %v1028
      %v1030 = vmul.f32 %v908, 1.442695
      %v1031 = vpow.pop %v1030
      %v1032 = vmul.f32 %v909, 1.442695
      %v1033 = vpow.pop %v1032
      %v1034 = vmul.f32 %v910, 1.442695
      %v1035 = vpow.pop %v1034
      %v1036 = vmul.f32 %v911, 1.442695
      %v1037 = vpow.pop %v1036
      %v1038 = vmul.f32 %v912, 1.442695
      %v1039 = vpow.pop %v1038
      %v1040 = vmul.f32 %v913, 1.442695
      %v1041 = vpow.pop %v1040
      %v1042 = vadd.f32 %v915, 1.0
      %v1043 = vadd.f32 %v917, 1.0
      %v1044 = vadd.f32 %v919, 1.0
      %v1045 = vadd.f32 %v921, 1.0
      %v1046 = vadd.f32 %v923, 1.0
      %v1047 = vadd.f32 %v925, 1.0
      %v1048 = vadd.f32 %v927, 1.0
      %v1049 = vadd.f32 %v929, 1.0
      %v1050 = vadd.f32 %v931, 1.0
      %v1051 = vadd.f32 %v933, 1.0
      %v1052 = vadd.f32 %v935, 1.0
      %v1053 = vadd.f32 %v937, 1.0
      %v1054 = vadd.f32 %v939, 1.0
      %v1055 = vadd.f32 %v941, 1.0
      %v1056 = vadd.f32 %v943, 1.0
      %v1057 = vadd.f32 %v945, 1.0
      %v1058 = vadd.f32 %v947, 1.0
      %v1059 = vadd.f32 %v949, 1.0
      %v1060 = vadd.f32 %v951, 1.0
      %v1061 = vadd.f32 %v953, 1.0
      %v1062 = vadd.f32 %v955, 1.0
      %v1063 = vadd.f32 %v957, 1.0
      %v1064 = vadd.f32 %v959, 1.0
      %v1065 = vadd.f32 %v961, 1.0
      %v1066 = vadd.f32 %v963, 1.0
      %v1067 = vadd.f32 %v965, 1.0
      %v1068 = vadd.f32 %v967, 1.0
      %v1069 = vadd.f32 %v969, 1.0
      %v1070 = vadd.f32 %v971, 1.0
      %v1071 = vadd.f32 %v973, 1.0
      %v1072 = vadd.f32 %v975, 1.0
      %v1073 = vadd.f32 %v977, 1.0
      %v1074 = vadd.f32 %v979, 1.0
      %v1075 = vadd.f32 %v981, 1.0
      %v1076 = vadd.f32 %v983, 1.0
      %v1077 = vadd.f32 %v985, 1.0
      %v1078 = vadd.f32 %v987, 1.0
      %v1079 = vadd.f32 %v989, 1.0
      %v1080 = vadd.f32 %v991, 1.0
      %v1081 = vadd.f32 %v993, 1.0
      %v1082 = vadd.f32 %v995, 1.0
      %v1083 = vadd.f32 %v997, 1.0
      %v1084 = vadd.f32 %v999, 1.0
      %v1085 = vadd.f32 %v1001, 1.0
      %v1086 = vadd.f32 %v1003, 1.0
      %v1087 = vadd.f32 %v1005, 1.0
      %v1088 = vadd.f32 %v1007, 1.0
      %v1089 = vadd.f32 %v1009, 1.0
      %v1090 = vadd.f32 %v1011, 1.0
      %v1091 = vadd.f32 %v1013, 1.0
      %v1092 = vadd.f32 %v1015, 1.0
      %v1093 = vadd.f32 %v1017, 1.0
      %v1094 = vadd.f32 %v1019, 1.0
      %v1095 = vadd.f32 %v1021, 1.0
      %v1096 = vadd.f32 %v1023, 1.0
      %v1097 = vadd.f32 %v1025, 1.0
      %v1098 = vadd.f32 %v1027, 1.0
      %v1099 = vadd.f32 %v1029, 1.0
      %v1100 = vadd.f32 %v1031, 1.0
      %v1101 = vadd.f32 %v1033, 1.0
      %v1102 = vadd.f32 %v1035, 1.0
      %v1103 = vadd.f32 %v1037, 1.0
      %v1104 = vadd.f32 %v1039, 1.0
      %v1105 = vadd.f32 %v1041, 1.0
      %v1106 = vrcp.pop %v1042
      %v1107 = vmul.f32 1.0, %v1106
      %v1108 = vrcp.pop %v1043
      %v1109 = vmul.f32 1.0, %v1108
      %v1110 = vrcp.pop %v1044
      %v1111 = vmul.f32 1.0, %v1110
      %v1112 = vrcp.pop %v1045
      %v1113 = vmul.f32 1.0, %v1112
      %v1114 = vrcp.pop %v1046
      %v1115 = vmul.f32 1.0, %v1114
      %v1116 = vrcp.pop %v1047
      %v1117 = vmul.f32 1.0, %v1116
      %v1118 = vrcp.pop %v1048
      %v1119 = vmul.f32 1.0, %v1118
      %v1120 = vrcp.pop %v1049
      %v1121 = vmul.f32 1.0, %v1120
      %v1122 = vrcp.pop %v1050
      %v1123 = vmul.f32 1.0, %v1122
      %v1124 = vrcp.pop %v1051
      %v1125 = vmul.f32 1.0, %v1124
      %v1126 = vrcp.pop %v1052
      %v1127 = vmul.f32 1.0, %v1126
      %v1128 = vrcp.pop %v1053
      %v1129 = vmul.f32 1.0, %v1128
      %v1130 = vrcp.pop %v1054
      %v1131 = vmul.f32 1.0, %v1130
      %v1132 = vrcp.pop %v1055
      %v1133 = vmul.f32 1.0, %v1132
      %v1134 = vrcp.pop %v1056
      %v1135 = vmul.f32 1.0, %v1134
      %v1136 = vrcp.pop %v1057
      %v1137 = vmul.f32 1.0, %v1136
      %v1138 = vrcp.pop %v1058
      %v1139 = vmul.f32 1.0, %v1138
      %v1140 = vrcp.pop %v1059
      %v1141 = vmul.f32 1.0, %v1140
      %v1142 = vrcp.pop %v1060
      %v1143 = vmul.f32 1.0, %v1142
      %v1144 = vrcp.pop %v1061
      %v1145 = vmul.f32 1.0, %v1144
      %v1146 = vrcp.pop %v1062
      %v1147 = vmul.f32 1.0, %v1146
      %v1148 = vrcp.pop %v1063
      %v1149 = vmul.f32 1.0, %v1148
      %v1150 = vrcp.pop %v1064
      %v1151 = vmul.f32 1.0, %v1150
      %v1152 = vrcp.pop %v1065
      %v1153 = vmul.f32 1.0, %v1152
      %v1154 = vrcp.pop %v1066
      %v1155 = vmul.f32 1.0, %v1154
      %v1156 = vrcp.pop %v1067
      %v1157 = vmul.f32 1.0, %v1156
      %v1158 = vrcp.pop %v1068
      %v1159 = vmul.f32 1.0, %v1158
      %v1160 = vrcp.pop %v1069
      %v1161 = vmul.f32 1.0, %v1160
      %v1162 = vrcp.pop %v1070
      %v1163 = vmul.f32 1.0, %v1162
      %v1164 = vrcp.pop %v1071
      %v1165 = vmul.f32 1.0, %v1164
      %v1166 = vrcp.pop %v1072
      %v1167 = vmul.f32 1.0, %v1166
      %v1168 = vrcp.pop %v1073
      %v1169 = vmul.f32 1.0, %v1168
      %v1170 = vrcp.pop %v1074
      %v1171 = vmul.f32 1.0, %v1170
      %v1172 = vrcp.pop %v1075
      %v1173 = vmul.f32 1.0, %v1172
      %v1174 = vrcp.pop %v1076
      %v1175 = vmul.f32 1.0, %v1174
      %v1176 = vrcp.pop %v1077
      %v1177 = vmul.f32 1.0, %v1176
      %v1178 = vrcp.pop %v1078
      %v1179 = vmul.f32 1.0, %v1178
      %v1180 = vrcp.pop %v1079
      %v1181 = vmul.f32 1.0, %v1180
      %v1182 = vrcp.pop %v1080
      %v1183 = vmul.f32 1.0, %v1182
      %v1184 = vrcp.pop %v1081
      %v1185 = vmul.f32 1.0, %v1184
      %v1186 = vrcp.pop %v1082
      %v1187 = vmul.f32 1.0, %v1186
      %v1188 = vrcp.pop %v1083
      %v1189 = vmul.f32 1.0, %v1188
      %v1190 = vrcp.pop %v1084
      %v1191 = vmul.f32 1.0, %v1190
      %v1192 = vrcp.pop %v1085
      %v1193 = vmul.f32 1.0, %v1192
      %v1194 = vrcp.pop %v1086
      %v1195 = vmul.f32 1.0, %v1194
      %v1196 = vrcp.pop %v1087
      %v1197 = vmul.f32 1.0, %v1196
      %v1198 = vrcp.pop %v1088
      %v1199 = vmul.f32 1.0, %v1198
      %v1200 = vrcp.pop %v1089
      %v1201 = vmul.f32 1.0, %v1200
      %v1202 = vrcp.pop %v1090
      %v1203 = vmul.f32 1.0, %v1202
      %v1204 = vrcp.pop %v1091
      %v1205 = vmul.f32 1.0, %v1204
      %v1206 = vrcp.pop %v1092
      %v1207 = vmul.f32 1.0, %v1206
      %v1208 = vrcp.pop %v1093
      %v1209 = vmul.f32 1.0, %v1208
      %v1210 = vrcp.pop %v1094
      %v1211 = vmul.f32 1.0, %v1210
      %v1212 = vrcp.pop %v1095
      %v1213 = vmul.f32 1.0, %v1212
      %v1214 = vrcp.pop %v1096
      %v1215 = vmul.f32 1.0, %v1214
      %v1216 = vrcp.pop %v1097
      %v1217 = vmul.f32 1.0, %v1216
      %v1218 = vrcp.pop %v1098
      %v1219 = vmul.f32 1.0, %v1218
      %v1220 = vrcp.pop %v1099
      %v1221 = vmul.f32 1.0, %v1220
      %v1222 = vrcp.pop %v1100
      %v1223 = vmul.f32 1.0, %v1222
      %v1224 = vrcp.pop %v1101
      %v1225 = vmul.f32 1.0, %v1224
      %v1226 = vrcp.pop %v1102
      %v1227 = vmul.f32 1.0, %v1226
      %v1228 = vrcp.pop %v1103
      %v1229 = vmul.f32 1.0, %v1228
      %v1230 = vrcp.pop %v1104
      %v1231 = vmul.f32 1.0, %v1230
      %v1232 = vrcp.pop %v1105
      %v1233 = vmul.f32 1.0, %v1232
      %v1234 = vmul.f32 %v596, %v1107
      %v1235 = vmul.f32 %v599, %v1109
      %v1236 = vmul.f32 %v604, %v1111
      %v1237 = vmul.f32 %v607, %v1113
      %v1238 = vmul.f32 %v612, %v1115
      %v1239 = vmul.f32 %v615, %v1117
      %v1240 = vmul.f32 %v620, %v1119
      %v1241 = vmul.f32 %v623, %v1121
      %v1242 = vmul.f32 %v628, %v1123
      %v1243 = vmul.f32 %v631, %v1125
      %v1244 = vmul.f32 %v636, %v1127
      %v1245 = vmul.f32 %v639, %v1129
      %v1246 = vmul.f32 %v644, %v1131
      %v1247 = vmul.f32 %v647, %v1133
      %v1248 = vmul.f32 %v652, %v1135
      %v1249 = vmul.f32 %v655, %v1137
      %v1250 = vmul.f32 %v660, %v1139
      %v1251 = vmul.f32 %v663, %v1141
      %v1252 = vmul.f32 %v668, %v1143
      %v1253 = vmul.f32 %v671, %v1145
      %v1254 = vmul.f32 %v676, %v1147
      %v1255 = vmul.f32 %v679, %v1149
      %v1256 = vmul.f32 %v684, %v1151
      %v1257 = vmul.f32 %v687, %v1153
      %v1258 = vmul.f32 %v692, %v1155
      %v1259 = vmul.f32 %v695, %v1157
      %v1260 = vmul.f32 %v700, %v1159
      %v1261 = vmul.f32 %v703, %v1161
      %v1262 = vmul.f32 %v708, %v1163
      %v1263 = vmul.f32 %v711, %v1165
      %v1264 = vmul.f32 %v716, %v1167
      %v1265 = vmul.f32 %v719, %v1169
      %v1266 = vmul.f32 %v724, %v1171
      %v1267 = vmul.f32 %v727, %v1173
      %v1268 = vmul.f32 %v732, %v1175
      %v1269 = vmul.f32 %v735, %v1177
      %v1270 = vmul.f32 %v740, %v1179
      %v1271 = vmul.f32 %v743, %v1181
      %v1272 = vmul.f32 %v748, %v1183
      %v1273 = vmul.f32 %v751, %v1185
      %v1274 = vmul.f32 %v756, %v1187
      %v1275 = vmul.f32 %v759, %v1189
      %v1276 = vmul.f32 %v764, %v1191
      %v1277 = vmul.f32 %v767, %v1193
      %v1278 = vmul.f32 %v772, %v1195
      %v1279 = vmul.f32 %v775, %v1197
      %v1280 = vmul.f32 %v780, %v1199
      %v1281 = vmul.f32 %v783, %v1201
      %v1282 = vmul.f32 %v788, %v1203
      %v1283 = vmul.f32 %v791, %v1205
      %v1284 = vmul.f32 %v796, %v1207
      %v1285 = vmul.f32 %v799, %v1209
      %v1286 = vmul.f32 %v804, %v1211
      %v1287 = vmul.f32 %v807, %v1213
      %v1288 = vmul.f32 %v812, %v1215
      %v1289 = vmul.f32 %v815, %v1217
      %v1290 = vmul.f32 %v820, %v1219
      %v1291 = vmul.f32 %v823, %v1221
      %v1292 = vmul.f32 %v828, %v1223
      %v1293 = vmul.f32 %v831, %v1225
      %v1294 = vmul.f32 %v836, %v1227
      %v1295 = vmul.f32 %v839, %v1229
      %v1296 = vmul.f32 %v844, %v1231
      %v1297 = vmul.f32 %v847, %v1233
      %v1298 = vpack.c.bf16 %v1235, %v1234
      %v1299 = vpack.c.bf16 %v1237, %v1236
      %v1300 = vpack.c.bf16 %v1239, %v1238
      %v1301 = vpack.c.bf16 %v1241, %v1240
      %v1302 = vpack.c.bf16 %v1243, %v1242
      %v1303 = vpack.c.bf16 %v1245, %v1244
      %v1304 = vpack.c.bf16 %v1247, %v1246
      %v1305 = vpack.c.bf16 %v1249, %v1248
      %v1306 = vpack.c.bf16 %v1251, %v1250
      %v1307 = vpack.c.bf16 %v1253, %v1252
      %v1308 = vpack.c.bf16 %v1255, %v1254
      %v1309 = vpack.c.bf16 %v1257, %v1256
      %v1310 = vpack.c.bf16 %v1259, %v1258
      %v1311 = vpack.c.bf16 %v1261, %v1260
      %v1312 = vpack.c.bf16 %v1263, %v1262
      %v1313 = vpack.c.bf16 %v1265, %v1264
      %v1314 = vpack.c.bf16 %v1267, %v1266
      %v1315 = vpack.c.bf16 %v1269, %v1268
      %v1316 = vpack.c.bf16 %v1271, %v1270
      %v1317 = vpack.c.bf16 %v1273, %v1272
      %v1318 = vpack.c.bf16 %v1275, %v1274
      %v1319 = vpack.c.bf16 %v1277, %v1276
      %v1320 = vpack.c.bf16 %v1279, %v1278
      %v1321 = vpack.c.bf16 %v1281, %v1280
      %v1322 = vpack.c.bf16 %v1283, %v1282
      %v1323 = vpack.c.bf16 %v1285, %v1284
      %v1324 = vpack.c.bf16 %v1287, %v1286
      %v1325 = vpack.c.bf16 %v1289, %v1288
      %v1326 = vpack.c.bf16 %v1291, %v1290
      %v1327 = vpack.c.bf16 %v1293, %v1292
      %v1328 = vpack.c.bf16 %v1295, %v1294
      %v1329 = vpack.c.bf16 %v1297, %v1296
      %v1362 = vunpack.c.l.b16 %v1298
      %v1363 = vunpack.c.h.b16 %v1298
      %v1364 = vunpack.c.l.b16 %v1299
      %v1365 = vunpack.c.h.b16 %v1299
      %v1366 = vunpack.c.l.b16 %v1300
      %v1367 = vunpack.c.h.b16 %v1300
      %v1368 = vunpack.c.l.b16 %v1301
      %v1369 = vunpack.c.h.b16 %v1301
      %v1370 = vunpack.c.l.b16 %v1302
      %v1371 = vunpack.c.h.b16 %v1302
      %v1372 = vunpack.c.l.b16 %v1303
      %v1373 = vunpack.c.h.b16 %v1303
      %v1374 = vunpack.c.l.b16 %v1304
      %v1375 = vunpack.c.h.b16 %v1304
      %v1376 = vunpack.c.l.b16 %v1305
      %v1377 = vunpack.c.h.b16 %v1305
      %v1378 = vunpack.c.l.b16 %v1306
      %v1379 = vunpack.c.h.b16 %v1306
      %v1380 = vunpack.c.l.b16 %v1307
      %v1381 = vunpack.c.h.b16 %v1307
      %v1382 = vunpack.c.l.b16 %v1308
      %v1383 = vunpack.c.h.b16 %v1308
      %v1384 = vunpack.c.l.b16 %v1309
      %v1385 = vunpack.c.h.b16 %v1309
      %v1386 = vunpack.c.l.b16 %v1310
      %v1387 = vunpack.c.h.b16 %v1310
      %v1388 = vunpack.c.l.b16 %v1311
      %v1389 = vunpack.c.h.b16 %v1311
      %v1390 = vunpack.c.l.b16 %v1312
      %v1391 = vunpack.c.h.b16 %v1312
      %v1392 = vunpack.c.l.b16 %v1313
      %v1393 = vunpack.c.h.b16 %v1313
      %v1394 = vunpack.c.l.b16 %v1314
      %v1395 = vunpack.c.h.b16 %v1314
      %v1396 = vunpack.c.l.b16 %v1315
      %v1397 = vunpack.c.h.b16 %v1315
      %v1398 = vunpack.c.l.b16 %v1316
      %v1399 = vunpack.c.h.b16 %v1316
      %v1400 = vunpack.c.l.b16 %v1317
      %v1401 = vunpack.c.h.b16 %v1317
      %v1402 = vunpack.c.l.b16 %v1318
      %v1403 = vunpack.c.h.b16 %v1318
      %v1404 = vunpack.c.l.b16 %v1319
      %v1405 = vunpack.c.h.b16 %v1319
      %v1406 = vunpack.c.l.b16 %v1320
      %v1407 = vunpack.c.h.b16 %v1320
      %v1408 = vunpack.c.l.b16 %v1321
      %v1409 = vunpack.c.h.b16 %v1321
      %v1410 = vunpack.c.l.b16 %v1322
      %v1411 = vunpack.c.h.b16 %v1322
      %v1412 = vunpack.c.l.b16 %v1323
      %v1413 = vunpack.c.h.b16 %v1323
      %v1414 = vunpack.c.l.b16 %v1324
      %v1415 = vunpack.c.h.b16 %v1324
      %v1416 = vunpack.c.l.b16 %v1325
      %v1417 = vunpack.c.h.b16 %v1325
      %v1418 = vunpack.c.l.b16 %v1326
      %v1419 = vunpack.c.h.b16 %v1326
      %v1420 = vunpack.c.l.b16 %v1327
      %v1421 = vunpack.c.h.b16 %v1327
      %v1422 = vunpack.c.l.b16 %v1328
      %v1423 = vunpack.c.h.b16 %v1328
      %v1424 = vunpack.c.l.b16 %v1329
      %v1425 = vunpack.c.h.b16 %v1329
      %v1426 = vpack.c.b16 %v1362, %v1362
      %v1427 = vpack.c.b16 %v1363, %v1363
      %v1428 = vpack.c.b16 %v1364, %v1364
      %v1429 = vpack.c.b16 %v1365, %v1365
      %v1430 = vpack.c.b16 %v1366, %v1366
      %v1431 = vpack.c.b16 %v1367, %v1367
      %v1432 = vpack.c.b16 %v1368, %v1368
      %v1433 = vpack.c.b16 %v1369, %v1369
      %v1434 = vpack.c.b16 %v1370, %v1370
      %v1435 = vpack.c.b16 %v1371, %v1371
      %v1436 = vpack.c.b16 %v1372, %v1372
      %v1437 = vpack.c.b16 %v1373, %v1373
      %v1438 = vpack.c.b16 %v1374, %v1374
      %v1439 = vpack.c.b16 %v1375, %v1375
      %v1440 = vpack.c.b16 %v1376, %v1376
      %v1441 = vpack.c.b16 %v1377, %v1377
      %v1442 = vpack.c.b16 %v1378, %v1378
      %v1443 = vpack.c.b16 %v1379, %v1379
      %v1444 = vpack.c.b16 %v1380, %v1380
      %v1445 = vpack.c.b16 %v1381, %v1381
      %v1446 = vpack.c.b16 %v1382, %v1382
      %v1447 = vpack.c.b16 %v1383, %v1383
      %v1448 = vpack.c.b16 %v1384, %v1384
      %v1449 = vpack.c.b16 %v1385, %v1385
      %v1450 = vpack.c.b16 %v1386, %v1386
      %v1451 = vpack.c.b16 %v1387, %v1387
      %v1452 = vpack.c.b16 %v1388, %v1388
      %v1453 = vpack.c.b16 %v1389, %v1389
      %v1454 = vpack.c.b16 %v1390, %v1390
      %v1455 = vpack.c.b16 %v1391, %v1391
      %v1456 = vpack.c.b16 %v1392, %v1392
      %v1457 = vpack.c.b16 %v1393, %v1393
      %v1458 = vpack.c.b16 %v1394, %v1394
      %v1459 = vpack.c.b16 %v1395, %v1395
      %v1460 = vpack.c.b16 %v1396, %v1396
      %v1461 = vpack.c.b16 %v1397, %v1397
      %v1462 = vpack.c.b16 %v1398, %v1398
      %v1463 = vpack.c.b16 %v1399, %v1399
      %v1464 = vpack.c.b16 %v1400, %v1400
      %v1465 = vpack.c.b16 %v1401, %v1401
      %v1466 = vpack.c.b16 %v1402, %v1402
      %v1467 = vpack.c.b16 %v1403, %v1403
      %v1468 = vpack.c.b16 %v1404, %v1404
      %v1469 = vpack.c.b16 %v1405, %v1405
      %v1470 = vpack.c.b16 %v1406, %v1406
      %v1471 = vpack.c.b16 %v1407, %v1407
      %v1472 = vpack.c.b16 %v1408, %v1408
      %v1473 = vpack.c.b16 %v1409, %v1409
      %v1474 = vpack.c.b16 %v1410, %v1410
      %v1475 = vpack.c.b16 %v1411, %v1411
      %v1476 = vpack.c.b16 %v1412, %v1412
      %v1477 = vpack.c.b16 %v1413, %v1413
      %v1478 = vpack.c.b16 %v1414, %v1414
      %v1479 = vpack.c.b16 %v1415, %v1415
      %v1480 = vpack.c.b16 %v1416, %v1416
      %v1481 = vpack.c.b16 %v1417, %v1417
      %v1482 = vpack.c.b16 %v1418, %v1418
      %v1483 = vpack.c.b16 %v1419, %v1419
      %v1484 = vpack.c.b16 %v1420, %v1420
      %v1485 = vpack.c.b16 %v1421, %v1421
      %v1486 = vpack.c.b16 %v1422, %v1422
      %v1487 = vpack.c.b16 %v1423, %v1423
      %v1488 = vpack.c.b16 %v1424, %v1424
      %v1489 = vpack.c.b16 %v1425, %v1425
      %vm1554 = vcmask 388096
      %1555 = vst.msk [vmem:[%s208] sm:$0xf] %vm1554, %v1426
      %1556 = vst.msk [vmem:[%s208 + $0x4] sm:$0xf] %vm1554, %v1427
      %1557 = vst.msk [vmem:[%s208 + $0x8] sm:$0xf] %vm1554, %v1428
      %1558 = vst.msk [vmem:[%s208 + $0xc] sm:$0xf] %vm1554, %v1429
      %1559 = vst.msk [vmem:[%s208 + $0x10] sm:$0xf] %vm1554, %v1430
      %1560 = vst.msk [vmem:[%s208 + $0x14] sm:$0xf] %vm1554, %v1431
      %1561 = vst.msk [vmem:[%s208 + $0x18] sm:$0xf] %vm1554, %v1432
      %1562 = vst.msk [vmem:[%s208 + $0x1c] sm:$0xf] %vm1554, %v1433
      %1563 = vst.msk [vmem:[%s208 + $0x20] sm:$0xf] %vm1554, %v1434
      %1564 = vst.msk [vmem:[%s208 + $0x24] sm:$0xf] %vm1554, %v1435
      %1565 = vst.msk [vmem:[%s208 + $0x28] sm:$0xf] %vm1554, %v1436
      %1566 = vst.msk [vmem:[%s208 + $0x2c] sm:$0xf] %vm1554, %v1437
      %1567 = vst.msk [vmem:[%s208 + $0x30] sm:$0xf] %vm1554, %v1438
      %1568 = vst.msk [vmem:[%s208 + $0x34] sm:$0xf] %vm1554, %v1439
      %1569 = vst.msk [vmem:[%s208 + $0x38] sm:$0xf] %vm1554, %v1440
      %1570 = vst.msk [vmem:[%s208 + $0x3c] sm:$0xf] %vm1554, %v1441
      %1571 = vst.msk [vmem:[%s208 + $0x40] sm:$0xf] %vm1554, %v1442
      %1572 = vst.msk [vmem:[%s208 + $0x44] sm:$0xf] %vm1554, %v1443
      %1573 = vst.msk [vmem:[%s208 + $0x48] sm:$0xf] %vm1554, %v1444
      %1574 = vst.msk [vmem:[%s208 + $0x4c] sm:$0xf] %vm1554, %v1445
      %1575 = vst.msk [vmem:[%s208 + $0x50] sm:$0xf] %vm1554, %v1446
      %1576 = vst.msk [vmem:[%s208 + $0x54] sm:$0xf] %vm1554, %v1447
      %1577 = vst.msk [vmem:[%s208 + $0x58] sm:$0xf] %vm1554, %v1448
      %1578 = vst.msk [vmem:[%s208 + $0x5c] sm:$0xf] %vm1554, %v1449
      %1579 = vst.msk [vmem:[%s208 + $0x60] sm:$0xf] %vm1554, %v1450
      %1580 = vst.msk [vmem:[%s208 + $0x64] sm:$0xf] %vm1554, %v1451
      %1581 = vst.msk [vmem:[%s208 + $0x68] sm:$0xf] %vm1554, %v1452
      %1582 = vst.msk [vmem:[%s208 + $0x6c] sm:$0xf] %vm1554, %v1453
      %1583 = vst.msk [vmem:[%s208 + $0x70] sm:$0xf] %vm1554, %v1454
      %1584 = vst.msk [vmem:[%s208 + $0x74] sm:$0xf] %vm1554, %v1455
      %1585 = vst.msk [vmem:[%s208 + $0x78] sm:$0xf] %vm1554, %v1456
      %1586 = vst.msk [vmem:[%s208 + $0x7c] sm:$0xf] %vm1554, %v1457
      %1587 = vst.msk [vmem:[%s208 + $0x80] sm:$0xf] %vm1554, %v1458
      %1588 = vst.msk [vmem:[%s208 + $0x84] sm:$0xf] %vm1554, %v1459
      %1589 = vst.msk [vmem:[%s208 + $0x88] sm:$0xf] %vm1554, %v1460
      %1590 = vst.msk [vmem:[%s208 + $0x8c] sm:$0xf] %vm1554, %v1461
      %1591 = vst.msk [vmem:[%s208 + $0x90] sm:$0xf] %vm1554, %v1462
      %1592 = vst.msk [vmem:[%s208 + $0x94] sm:$0xf] %vm1554, %v1463
      %1593 = vst.msk [vmem:[%s208 + $0x98] sm:$0xf] %vm1554, %v1464
      %1594 = vst.msk [vmem:[%s208 + $0x9c] sm:$0xf] %vm1554, %v1465
      %1595 = vst.msk [vmem:[%s208 + $0xa0] sm:$0xf] %vm1554, %v1466
      %1596 = vst.msk [vmem:[%s208 + $0xa4] sm:$0xf] %vm1554, %v1467
      %1597 = vst.msk [vmem:[%s208 + $0xa8] sm:$0xf] %vm1554, %v1468
      %1598 = vst.msk [vmem:[%s208 + $0xac] sm:$0xf] %vm1554, %v1469
      %1599 = vst.msk [vmem:[%s208 + $0xb0] sm:$0xf] %vm1554, %v1470
      %1600 = vst.msk [vmem:[%s208 + $0xb4] sm:$0xf] %vm1554, %v1471
      %1601 = vst.msk [vmem:[%s208 + $0xb8] sm:$0xf] %vm1554, %v1472
      %1602 = vst.msk [vmem:[%s208 + $0xbc] sm:$0xf] %vm1554, %v1473
      %1603 = vst.msk [vmem:[%s208 + $0xc0] sm:$0xf] %vm1554, %v1474
      %1604 = vst.msk [vmem:[%s208 + $0xc4] sm:$0xf] %vm1554, %v1475
      %1605 = vst.msk [vmem:[%s208 + $0xc8] sm:$0xf] %vm1554, %v1476
      %1606 = vst.msk [vmem:[%s208 + $0xcc] sm:$0xf] %vm1554, %v1477
      %1607 = vst.msk [vmem:[%s208 + $0xd0] sm:$0xf] %vm1554, %v1478
      %1608 = vst.msk [vmem:[%s208 + $0xd4] sm:$0xf] %vm1554, %v1479
      %1609 = vst.msk [vmem:[%s208 + $0xd8] sm:$0xf] %vm1554, %v1480
      %1610 = vst.msk [vmem:[%s208 + $0xdc] sm:$0xf] %vm1554, %v1481
      %1611 = vst.msk [vmem:[%s208 + $0xe0] sm:$0xf] %vm1554, %v1482
      %1612 = vst.msk [vmem:[%s208 + $0xe4] sm:$0xf] %vm1554, %v1483
      %1613 = vst.msk [vmem:[%s208 + $0xe8] sm:$0xf] %vm1554, %v1484
      %1614 = vst.msk [vmem:[%s208 + $0xec] sm:$0xf] %vm1554, %v1485
      %1615 = vst.msk [vmem:[%s208 + $0xf0] sm:$0xf] %vm1554, %v1486
      %1616 = vst.msk [vmem:[%s208 + $0xf4] sm:$0xf] %vm1554, %v1487
      %1617 = vst.msk [vmem:[%s208 + $0xf8] sm:$0xf] %vm1554, %v1488
      %1618 = vst.msk [vmem:[%s208 + $0xfc] sm:$0xf] %vm1554, %v1489
      %s1619 = smul.u32 64, %s19
      %p1620 = scmp.lt.s32.totalorder %s18, 1
      %s1621 = scalar_select %p1620, %s18, 1
      %p1622 = scmp.lt.s32.totalorder %s1619, 127
      %s1623 = scalar_select %p1622, %s1619, 127
      %s1624 = smul.addr %s1621, 128
      %s1625 = sadd.s32 %s1623, %s1624
      %s1626 = smul.addr %s1625, 4
      %s1627 = scalar_lea.vmem %s3, %s1626
      // Predicated region
      $region33: #{pointwise_conv.1} parent=31 // pred_check
        %p1628 = pneg %p116
      $region34: #{pointwise_conv.1} parent=31 // pred_check_branch
        %1630 = sbr.rel (%p1628) target = $region36
      $region35: #{pointwise_conv.1} parent=31 // pred_region
        %s1631 = smul.u32 64, %s19
      $region36: #{pointwise_conv.1} parent=31 // pred_fallthru
        _
    $region32: #{pointwise_conv.1} parent=5 // pred_fallthru
      _
    %p1632 = scmp.le.s32.totalorder 2, %s9
    // Predicated region
    $region37: #{pointwise_conv.1} parent=5 // pred_check
      %p1633 = pneg %p1632
    $region38: #{pointwise_conv.1} parent=5 // pred_check_branch
      %1635 = sbr.rel (%p1633) target = $region40
    $region39: #{pointwise_conv.1} parent=5 // pred_region
      %s1636 = ssub.s32 %s9, 2
      // Predicated region
      $region41: #{pointwise_conv.1} parent=39 // pred_check
        %p1637 = pneg %p122
      $region42: #{pointwise_conv.1} parent=39 // pred_check_branch
        %1639 = sbr.rel (%p1637) target = $region44
      $region43: #{pointwise_conv.1} parent=39 // pred_region
        %s1640 = smul.u32 64, %s21
        %p1641 = scmp.lt.s32.totalorder %s20, 1
        %s1642 = scalar_select %p1641, %s20, 1
        %p1643 = scmp.lt.s32.totalorder %s1640, 127
        %s1644 = scalar_select %p1643, %s1640, 127
        %s1645 = smul.addr %s1642, 128
        %s1646 = sadd.s32 %s1644, %s1645
        %s1647 = smul.addr %s1646, 4
        %s1648 = scalar_lea.vmem %s3, %s1647
      $region44: #{pointwise_conv.1} parent=39 // pred_fallthru
        _
    $region40: #{pointwise_conv.1} parent=5 // pred_fallthru
      _
  $region6: #{pointwise_conv.1} parent=0 // loop_footer
    %s13 = sadd.s32 1, %s9
  $region7: #{pointwise_conv.1} parent=0 // loop_footer_branch
    %8 = sbr.rel target = $region3
  $region8: #{pointwise_conv.1} parent=0 // loop_exit
    _

</llo_original>
